<compile_context>
chip_gen: v5e
topology: v5e:2x2
jax: 0.10.0
libtpu: 0.0.40
codegen_flags: <defaults>
</compile_context>

<pallas_src>
import functools

import jax
import jax.numpy as jnp
from jax.experimental import pallas as pl
from jax.experimental.pallas import tpu as pltpu

LANE = 128


def _round_up(x, m):
    return (x + m - 1) // m * m


def _pick_tile(m, target=1024):
    """Largest power-of-two tile <= target that divides m (m itself if small)."""
    if m <= target:
        return m
    t = target
    while t >= 8:
        if m % t == 0:
            return t
        t //= 2
    return m


# ----------------------------------------------------------------------------
# Pallas kernels
# ----------------------------------------------------------------------------

def _matmul_stats_kernel(p_ref, w_ref, y_ref, sum_ref, sq_ref):
    """Tiled conv matmul + per-channel sum / sum-of-squares accumulation.

    p_ref:   (tm, K)  bf16 patch tile
    w_ref:   (K, Cp)  bf16 flattened conv weight (channels padded to 128)
    y_ref:   (tm, Cp) bf16 pre-BN conv output tile (stats taken from f32 acc)
    sum_ref: (1, Cp)  f32  running per-channel sum   (resident across M grid)
    sq_ref:  (1, Cp)  f32  running per-channel sum of squares
    """
    i = pl.program_id(0)
    y = jnp.dot(p_ref[...], w_ref[...], preferred_element_type=jnp.float32)
    y_ref[...] = y.astype(y_ref.dtype)

    @pl.when(i == 0)
    def _():
        sum_ref[...] = jnp.zeros_like(sum_ref)
        sq_ref[...] = jnp.zeros_like(sq_ref)

    sum_ref[...] += jnp.sum(y, axis=0, keepdims=True)
    sq_ref[...] += jnp.sum(y * y, axis=0, keepdims=True)


def _bn_act_kernel(y_ref, sum_ref, sq_ref, g_ref, b_ref, o_ref,
                   *, act, eps, neg_slope, inv_m):
    """BatchNorm (training-mode batch stats, one-pass var) + activation."""
    y = y_ref[...].astype(jnp.float32)
    mean = sum_ref[...] * inv_m
    var = sq_ref[...] * inv_m - mean * mean       # E[y^2] - mean^2 (biased)
    scale = jax.lax.rsqrt(var + eps) * g_ref[...]
    shift = b_ref[...] - mean * scale             # per-channel, folded once
    z = y * scale + shift
    if act == "leaky":
        z = jnp.where(z > 0, z, neg_slope * z)    # LeakyReLU(0.2)
    else:
        z = jnp.tanh(z)                           # Tanh (c5)
    o_ref[...] = z.astype(o_ref.dtype)


def _lstm_kernel(x_ref, wih_ref, whh_ref, b_ref, o_ref, h_sc, c_sc,
                 *, hidden_p):
    """Single-layer unidirectional LSTM (PyTorch gate order i, f, g, o).

    x_ref:   (T, B, D)     inputs (time-major)
    wih_ref: (D, 4*Hp)     W_ih^T, gates padded to Hp=128 lanes each
    whh_ref: (Hp, 4*Hp)    W_hh^T, zero rows/cols in the padded region
    b_ref:   (1, 4*Hp)     b_ih + b_hh (padded)
    o_ref:   (T, B, Hp)    hidden states for every step
    h_sc/c_sc: (B, Hp)     VMEM scratch state
    """
    Hp = hidden_p
    T, B, D = x_ref.shape
    h_sc[...] = jnp.zeros_like(h_sc)
    c_sc[...] = jnp.zeros_like(c_sc)

    # Hoist the input projection out of the recurrent loop: one MXU matmul.
    gx = jnp.dot(x_ref[...].reshape(T * B, D), wih_ref[...],
                 preferred_element_type=jnp.float32).reshape(T, B, 4 * Hp)

    for t in range(T):                            # T small & static -> unrolled
        gates = (gx[t]
                 + jnp.dot(h_sc[...], whh_ref[...],
                           preferred_element_type=jnp.float32)
                 + b_ref[...])                    # (B, 4*Hp)
        # Gate slices at 128-lane boundaries (Hp == 128): no lane shuffles.
        i = jax.nn.sigmoid(gates[:, 0 * Hp:1 * Hp])
        f = jax.nn.sigmoid(gates[:, 1 * Hp:2 * Hp])
        g = jnp.tanh(gates[:, 2 * Hp:3 * Hp])
        o = jax.nn.sigmoid(gates[:, 3 * Hp:4 * Hp])
        c_new = f * c_sc[...] + i * g
        h_new = o * jnp.tanh(c_new)
        c_sc[...] = c_new
        h_sc[...] = h_new
        o_ref[t] = h_new


# ----------------------------------------------------------------------------
# Wrappers (glue)
# ----------------------------------------------------------------------------

def _im2col_nhwc(x_nhwc, ksize, stride, pad):
    """Patch matrix (N*OH*OW, KH*KW*C); column order (KH, KW, C)."""
    N, H, W, C = x_nhwc.shape
    xp = jnp.pad(x_nhwc, ((0, 0), (pad, pad), (pad, pad), (0, 0)))
    OH = (H + 2 * pad - ksize) // stride + 1
    OW = (W + 2 * pad - ksize) // stride + 1
    cols = []
    for kh in range(ksize):
        for kw in range(ksize):
            cols.append(xp[:, kh:kh + stride * OH:stride,
                           kw:kw + stride * OW:stride, :])   # (N, OH, OW, C)
    p = jnp.stack(cols, axis=3)                               # (N,OH,OW,KK,C)
    p = p.reshape(N * OH * OW, ksize * ksize * C)
    return p, OH, OW


def _conv_bn_act(patches, w_mat, gamma, beta, act, out_dtype,
                 eps=1e-5, neg_slope=0.2):
    """Fused conv-matmul + BN(train) + activation, two tiled Pallas passes."""
    M, K = patches.shape
    C = w_mat.shape[1]
    Cp = _round_up(C, LANE)

    # Lane-dense channel padding (unmasked stores, full MXU N tile).
    w_p = jnp.zeros((K, Cp), jnp.bfloat16).at[:, :C].set(
        w_mat.astype(jnp.bfloat16))
    g_p = jnp.zeros((1, Cp), jnp.float32).at[0, :C].set(gamma)
    b_p = jnp.zeros((1, Cp), jnp.float32).at[0, :C].set(beta)
    p_bf = patches.astype(jnp.bfloat16)

    tm = _pick_tile(M)
    assert M % tm == 0, (M, tm)
    nm = M // tm

    # Pass 1: matmul + BN batch statistics (reduction over M -> "arbitrary").
    y, csum, csq = pl.pallas_call(
        _matmul_stats_kernel,
        out_shape=(jax.ShapeDtypeStruct((M, Cp), jnp.bfloat16),
                   jax.ShapeDtypeStruct((1, Cp), jnp.float32),
                   jax.ShapeDtypeStruct((1, Cp), jnp.float32)),
        grid=(nm,),
        in_specs=[pl.BlockSpec((tm, K), lambda i: (i, 0)),
                  pl.BlockSpec((K, Cp), lambda i: (0, 0))],
        out_specs=(pl.BlockSpec((tm, Cp), lambda i: (i, 0)),
                   pl.BlockSpec((1, Cp), lambda i: (0, 0)),
                   pl.BlockSpec((1, Cp), lambda i: (0, 0))),
        compiler_params=pltpu.CompilerParams(
            dimension_semantics=("arbitrary",)),
        cost_estimate=pl.CostEstimate(
            flops=2 * M * K * Cp,
            transcendentals=0,
            bytes_accessed=M * K * 2 + K * Cp * 2 + M * Cp * 2 + 2 * Cp * 4),
    )(p_bf, w_p)

    # Pass 2: normalize + activation (independent per tile -> "parallel").
    out = pl.pallas_call(
        functools.partial(_bn_act_kernel, act=act, eps=eps,
                          neg_slope=neg_slope, inv_m=1.0 / M),
        out_shape=jax.ShapeDtypeStruct((M, Cp), out_dtype),
        grid=(nm,),
        in_specs=[pl.BlockSpec((tm, Cp), lambda i: (i, 0)),
                  pl.BlockSpec((1, Cp), lambda i: (0, 0)),
                  pl.BlockSpec((1, Cp), lambda i: (0, 0)),
                  pl.BlockSpec((1, Cp), lambda i: (0, 0)),
                  pl.BlockSpec((1, Cp), lambda i: (0, 0))],
        out_specs=pl.BlockSpec((tm, Cp), lambda i: (i, 0)),
        compiler_params=pltpu.CompilerParams(
            dimension_semantics=("parallel",)),
        cost_estimate=pl.CostEstimate(
            flops=4 * M * Cp,
            transcendentals=M * Cp if act != "leaky" else 0,
            bytes_accessed=M * Cp * 2 + 4 * Cp * 4
            + M * Cp * jnp.dtype(out_dtype).itemsize),
    )(y, csum, csq, g_p, b_p)

    return out[:, :C]


def conv_block(x_nhwc, params, act, ksize, stride, pad, out_dtype=jnp.bfloat16):
    """One `conv` module: Conv2d(k,s,p) + BatchNorm2d(train) + activation."""
    w, _b, gamma, beta = params   # conv bias cancels under training-mode BN
    cout = w.shape[0]
    patches, OH, OW = _im2col_nhwc(x_nhwc, ksize, stride, pad)
    # OIHW -> (KH, KW, I, O) flattening matches the (KH, KW, C) patch columns.
    w_mat = jnp.transpose(w, (2, 3, 1, 0)).reshape(-1, cout)
    y = _conv_bn_act(patches, w_mat, gamma, beta, act, out_dtype)
    N = x_nhwc.shape[0]
    return y.reshape(N, OH, OW, cout)                     # stay NHWC


def lstm_forward(x_btd, wih, whh, bih, bhh):
    B, T, D = x_btd.shape
    H = whh.shape[1]
    Hp = _round_up(H, LANE)   # pad hidden so gate slices are whole vregs

    def pad_gates(w_g, rows):
        # (4H, rows) -> (rows, 4*Hp), gate-major lanes, zeros in padded region
        w4 = w_g.reshape(4, H, rows)
        out = jnp.zeros((4, Hp, rows), w_g.dtype).at[:, :H, :].set(w4)
        return out.reshape(4 * Hp, rows).T

    wih_p = pad_gates(wih, D)                                  # (D, 4Hp)
    whh_p = jnp.zeros((Hp, 4 * Hp), whh.dtype).at[:H, :].set(
        pad_gates(whh, H))                                     # (Hp, 4Hp)
    b4 = (bih + bhh).reshape(4, H)
    b_p = jnp.zeros((4, Hp), jnp.float32).at[:, :H].set(b4).reshape(1, 4 * Hp)

    x_tbd = jnp.transpose(x_btd, (1, 0, 2))                    # (T, B, D)
    out = pl.pallas_call(
        functools.partial(_lstm_kernel, hidden_p=Hp),
        out_shape=jax.ShapeDtypeStruct((T, B, Hp), jnp.float32),
        in_specs=[pl.BlockSpec(memory_space=pltpu.MemorySpace.VMEM)] * 4,
        out_specs=pl.BlockSpec(memory_space=pltpu.MemorySpace.VMEM),
        scratch_shapes=[pltpu.VMEM((B, Hp), jnp.float32),
                        pltpu.VMEM((B, Hp), jnp.float32)],
    )(x_tbd, wih_p, whh_p, b_p)
    return jnp.transpose(out[:, :, :H], (1, 0, 2))             # (B, T, H)


def encoder_forward(x, params, cfg):
    # x: (batch, frames, channels, H, W)
    x = x.reshape(-1, cfg["channels"], cfg["image_height"], cfg["image_width"])
    h = jnp.transpose(x, (0, 2, 3, 1))                # NCHW -> NHWC once
    h = conv_block(h, params["c1"], "leaky", 4, 2, 1)
    h = conv_block(h, params["c2"], "leaky", 4, 2, 1)
    h = conv_block(h, params["c3"], "leaky", 4, 2, 1)
    h = conv_block(h, params["c4"], "leaky", 4, 2, 1)
    # Final block in f32: feeds the LSTM directly.
    h = conv_block(h, params["c5"], "tanh", 4, 1, 0,
                   out_dtype=jnp.float32)             # -> (N, 1, 1, Cout)
    h = h.reshape(-1, cfg["frames"], cfg["conv_output_dim"])
    if cfg["lstm"] in ("encoder", "both"):
        h = lstm_forward(h, *params["lstm"])
    return h


# ----------------------------------------------------------------------------
# Deterministic parameter init
# ----------------------------------------------------------------------------

def _init_conv_block(key, cin, cout, k=4):
    k1, k2, k3, k4 = jax.random.split(key, 4)
    w = 0.05 * jax.random.normal(k1, (cout, cin, k, k), jnp.float32)
    b = 0.05 * jax.random.normal(k2, (cout,), jnp.float32)
    gamma = 1.0 + 0.1 * jax.random.normal(k3, (cout,), jnp.float32)
    beta = 0.1 * jax.random.normal(k4, (cout,), jnp.float32)
    return (w, b, gamma, beta)


def init_params(key, cfg):
    cd = cfg["conv_dim"]
    keys = jax.random.split(key, 6)
    params = {
        "c1": _init_conv_block(keys[0], cfg["channels"], cd),
        "c2": _init_conv_block(keys[1], cd, cd * 2),
        "c3": _init_conv_block(keys[2], cd * 2, cd * 4),
        "c4": _init_conv_block(keys[3], cd * 4, cd * 8),
        "c5": _init_conv_block(keys[4], cd * 8, cfg["conv_output_dim"]),
    }
    if cfg["lstm"] in ("encoder", "both"):
        D, H = cfg["conv_output_dim"], cfg["encoder_lstm_output_dim"]
        lk = jax.random.split(keys[5], 4)
        wih = 0.1 * jax.random.normal(lk[0], (4 * H, D), jnp.float32)
        whh = 0.1 * jax.random.normal(lk[1], (4 * H, H), jnp.float32)
        bih = 0.1 * jax.random.normal(lk[2], (4 * H,), jnp.float32)
        bhh = 0.1 * jax.random.normal(lk[3], (4 * H,), jnp.float32)
        params["lstm"] = (wih, whh, bih, bhh)
    return params


# ----------------------------------------------------------------------------
# Main
# ----------------------------------------------------------------------------

if __name__ == "__main__":
    # image must be 64x64 so that four stride-2 convs + a 4x4 valid conv -> 1x1
    cfg = dict(
        frames=4,
        channels=3,
        image_height=64,
        image_width=64,
        conv_dim=8,
        conv_output_dim=16,
        encoder_lstm_output_dim=32,
        lstm="encoder",
    )
    batch = 2

    key = jax.random.PRNGKey(0)
    pkey, xkey = jax.random.split(key)
    params = init_params(pkey, cfg)

    x = jax.random.normal(
        xkey,
        (batch, cfg["frames"], cfg["channels"],
         cfg["image_height"], cfg["image_width"]),
        jnp.float32)

    out = encoder_forward(x, params, cfg)
    out = jax.block_until_ready(out)

    expected_shape = (batch, cfg["frames"], cfg["encoder_lstm_output_dim"])
    assert out.shape == expected_shape, (out.shape, expected_shape)
    assert bool(jnp.all(jnp.isfinite(out)))
    print("KERNEL_OK")
</pallas_src>

<mosaic_0001>
module attributes {stable_mosaic.version = 11 : i64} {
  func.func @_matmul_stats_kernel(%arg0: i32, %arg1: memref<1024x48xbf16, #tpu.memory_space<vmem>>, %arg2: memref<48x128xbf16, #tpu.memory_space<vmem>>, %arg3: memref<1024x128xbf16, #tpu.memory_space<vmem>>, %arg4: memref<1x128xf32, #tpu.memory_space<vmem>>, %arg5: memref<1x128xf32, #tpu.memory_space<vmem>>) attributes {dimension_semantics = [#tpu.dimension_semantics<arbitrary>], iteration_bounds = array<i64: 8>, scalar_prefetch = 0 : i64, scratch_operands = 0 : i64, tpu.core_type = #tpu.core_type<tc>, window_params = [{transform_indices = @transform_0, window_bounds = array<i64: 1024, 48>}, {pipeline_mode = #tpu.pipeline_mode<synchronous>, transform_indices = @transform_1, window_bounds = array<i64: 48, 128>}, {transform_indices = @transform_2, window_bounds = array<i64: 1024, 128>}, {pipeline_mode = #tpu.pipeline_mode<synchronous>, transform_indices = @transform_3, window_bounds = array<i64: 1, 128>}, {pipeline_mode = #tpu.pipeline_mode<synchronous>, transform_indices = @transform_4, window_bounds = array<i64: 1, 128>}]} {
    %c0 = arith.constant 0 : index
    %c0_0 = arith.constant 0 : index
    %0 = vector.load %arg1[%c0, %c0_0] : memref<1024x48xbf16, #tpu.memory_space<vmem>>, vector<1024x48xbf16>
    %c0_1 = arith.constant 0 : index
    %c0_2 = arith.constant 0 : index
    %1 = vector.load %arg2[%c0_1, %c0_2] : memref<48x128xbf16, #tpu.memory_space<vmem>>, vector<48x128xbf16>
    %cst = arith.constant dense<0.000000e+00> : vector<1024x128xf32>
    %2 = tpu.matmul %0, %1, %cst {dimension_numbers = #tpu.dot_dimension_numbers<[1], [0], [0], [1], [0, 0, 1, 1], [], []>} : vector<1024x48xbf16>, vector<48x128xbf16>, vector<1024x128xf32> -> vector<1024x128xf32>
    %3 = arith.truncf %2 : vector<1024x128xf32> to vector<1024x128xbf16>
    %c0_3 = arith.constant 0 : index
    %c0_4 = arith.constant 0 : index
    %4 = vector.load %arg3[%c0_3, %c0_4] : memref<1024x128xbf16, #tpu.memory_space<vmem>>, vector<1024x128xbf16>
    tpu.vector_store %arg3[%c0_3, %c0_4], %3 {strides = array<i32>} : memref<1024x128xbf16, #tpu.memory_space<vmem>>, vector<1024x128xbf16>,
    %c0_i32 = arith.constant 0 : i32
    %5 = arith.cmpi eq, %arg0, %c0_i32 : i32
    %6 = arith.extui %5 : i1 to i32
    %c0_i32_5 = arith.constant 0 : i32
    %7 = arith.cmpi ne, %6, %c0_i32_5 : i32
    scf.if %7 {
      %cst_16 = arith.constant 0.000000e+00 : f32
      %19 = vector.broadcast %cst_16 : f32 to vector<1x128xf32>
      %c0_17 = arith.constant 0 : index
      %c0_18 = arith.constant 0 : index
      %20 = vector.load %arg4[%c0_17, %c0_18] : memref<1x128xf32, #tpu.memory_space<vmem>>, vector<1x128xf32>
      tpu.vector_store %arg4[%c0_17, %c0_18], %19 {strides = array<i32>} : memref<1x128xf32, #tpu.memory_space<vmem>>, vector<1x128xf32>,
      %cst_19 = arith.constant 0.000000e+00 : f32
      %21 = vector.broadcast %cst_19 : f32 to vector<1x128xf32>
      %c0_20 = arith.constant 0 : index
      %c0_21 = arith.constant 0 : index
      %22 = vector.load %arg5[%c0_20, %c0_21] : memref<1x128xf32, #tpu.memory_space<vmem>>, vector<1x128xf32>
      tpu.vector_store %arg5[%c0_20, %c0_21], %21 {strides = array<i32>} : memref<1x128xf32, #tpu.memory_space<vmem>>, vector<1x128xf32>,
    } else {
    }
    %c0_6 = arith.constant 0 : index
    %c0_7 = arith.constant 0 : index
    %8 = vector.load %arg4[%c0_6, %c0_7] : memref<1x128xf32, #tpu.memory_space<vmem>>, vector<1x128xf32>
    %cst_8 = arith.constant dense<0.000000e+00> : vector<128xf32>
    %9 = vector.multi_reduction <add>, %2, %cst_8 [0] : vector<1024x128xf32> to vector<128xf32>
    %10 = vector.shape_cast %9 : vector<128xf32> to vector<1x128xf32>
    %11 = arith.addf %8, %10 : vector<1x128xf32>
    %c0_9 = arith.constant 0 : index
    %c0_10 = arith.constant 0 : index
    %12 = vector.load %arg4[%c0_9, %c0_10] : memref<1x128xf32, #tpu.memory_space<vmem>>, vector<1x128xf32>
    tpu.vector_store %arg4[%c0_9, %c0_10], %11 {strides = array<i32>} : memref<1x128xf32, #tpu.memory_space<vmem>>, vector<1x128xf32>,
    %c0_11 = arith.constant 0 : index
    %c0_12 = arith.constant 0 : index
    %13 = vector.load %arg5[%c0_11, %c0_12] : memref<1x128xf32, #tpu.memory_space<vmem>>, vector<1x128xf32>
    %14 = arith.mulf %2, %2 : vector<1024x128xf32>
    %cst_13 = arith.constant dense<0.000000e+00> : vector<128xf32>
    %15 = vector.multi_reduction <add>, %14, %cst_13 [0] : vector<1024x128xf32> to vector<128xf32>
    %16 = vector.shape_cast %15 : vector<128xf32> to vector<1x128xf32>
    %17 = arith.addf %13, %16 : vector<1x128xf32>
    %c0_14 = arith.constant 0 : index
    %c0_15 = arith.constant 0 : index
    %18 = vector.load %arg5[%c0_14, %c0_15] : memref<1x128xf32, #tpu.memory_space<vmem>>, vector<1x128xf32>
    tpu.vector_store %arg5[%c0_14, %c0_15], %17 {strides = array<i32>} : memref<1x128xf32, #tpu.memory_space<vmem>>, vector<1x128xf32>,
    return
  }
  func.func @transform_0(%arg0: i32) -> (i32, i32) {
    %c0_i32 = arith.constant 0 : i32
    %c0_i32_0 = arith.constant 0 : i32
    return %arg0, %c0_i32 : i32, i32
  }
  func.func @transform_1(%arg0: i32) -> (i32, i32) {
    %c0_i32 = arith.constant 0 : i32
    %c0_i32_0 = arith.constant 0 : i32
    %c0_i32_1 = arith.constant 0 : i32
    return %c0_i32, %c0_i32_0 : i32, i32
  }
  func.func @transform_2(%arg0: i32) -> (i32, i32) {
    %c0_i32 = arith.constant 0 : i32
    %c0_i32_0 = arith.constant 0 : i32
    return %arg0, %c0_i32 : i32, i32
  }
  func.func @transform_3(%arg0: i32) -> (i32, i32) {
    %c0_i32 = arith.constant 0 : i32
    %c0_i32_0 = arith.constant 0 : i32
    %c0_i32_1 = arith.constant 0 : i32
    return %c0_i32, %c0_i32_0 : i32, i32
  }
  func.func @transform_4(%arg0: i32) -> (i32, i32) {
    %c0_i32 = arith.constant 0 : i32
    %c0_i32_0 = arith.constant 0 : i32
    %c0_i32_1 = arith.constant 0 : i32
    return %c0_i32, %c0_i32_0 : i32, i32
  }
}

</mosaic_0001>

<llo_original>
// kernel: tpu_custom_call.1
$region0: #{tpu_custom_call.1}
  #allocation0 [shape = 'u32[]', space=smem, size = 0x4, offset = 0x4, fixed_abs, tag = 'smem constant byte address 0x4 - core index']
  #allocation1 [shape = 'u32[72,128]{1,0:T(1,128)}', space=vmem, size = 0x9000, scoped, tag = 'internal scratch']
  %s0 = inlined_call_operand.vmem [shape: bf16[8192,48], index: 0, kind: input, shape index: {}]
  %s1 = inlined_call_operand.vmem [shape: bf16[48,128], index: 1, kind: input, shape index: {}]
  %s2 = inlined_call_operand.hbm [shape: bf16[8192,128], index: 2, kind: output, shape index: {0}]
  %s3 = inlined_call_operand.hbm [shape: f32[1,128], index: 3, kind: output, shape index: {1}]
  %s4 = inlined_call_operand.hbm [shape: f32[1,128], index: 4, kind: output, shape index: {2}]
  %5 = xla_tuple %s2, %s3, %s4
  %s6 = sld [smem:[#allocation0]]
  $region61: #{tpu_custom_call.1} parent=0
    _
  %s8 = ssub.s32 1, %s6
  %s9 = scalar_select 0, %s8, %s6
  $region1: #{tpu_custom_call.1} parent=0
    #allocation2 [shape = 'u8[524288]{0}', space=vmem, size = 0x80000, scoped, tag = 'output window, operand 0']
    #allocation3 [shape = 's32[2]{0}', space=sflag, size = 0x8, scoped, tag = 'scoped memory for tpu_custom_call.1']
    #allocation4 [shape = 'u8[512]{0}', space=vmem, size = 0x400, scoped, tag = 'output window, operand 1, single buffered']
    #allocation5 [shape = 's32[1]{0}', space=sflag, size = 0x4, scoped, tag = 'scoped memory for tpu_custom_call.1']
    #allocation6 [shape = 'u8[512]{0}', space=vmem, size = 0x400, scoped, tag = 'output window, operand 2, single buffered']
    %10 = vsyncpa [#allocation3], 0
    %s11 = scalar_lea.sflag [#allocation3], 1
    %12 = vsyncpa %s11, 0
    %13 = vsyncpa [#allocation5], 0
    loop: start=0, step=1, limit=10
    $region2: #{tpu_custom_call.1} parent=1 // loop_pre_header
      _
    $region3: #{tpu_custom_call.1} parent=1 // loop_header
      %s15 = sphi 0, %s19
      %p16 = scmp.ge.s32.totalorder %s15, 10
      %s25 = sphi 0, %s27
      %s28 = sphi 0, %s25
      %s29 = sphi 0, %s28
      %s45 = sphi 0, %s29
      %s49 = sphi 0, %s49
      %s51 = sphi 0, %s49
      %s52 = sphi 0, %s51
      %s66 = sphi 0, %s52
      %s72 = sphi 0, %s74
      %s75 = sphi 0, %s72
      %s76 = sphi 0, %s75
      %s92 = sphi 0, %s76
      %s96 = sphi 0, %s96
      %s98 = sphi 0, %s96
      %s99 = sphi 0, %s98
      %s113 = sphi 0, %s99
      %s117 = sphi 0, %s117
      %s119 = sphi 0, %s117
      %s120 = sphi 0, %s119
      %s134 = sphi 0, %s120
    $region4: #{tpu_custom_call.1} parent=1 // loop_header_branch
      %18 = sbr.rel (%p16) target = $region8
    $region5: #{tpu_custom_call.1} parent=1 // loop_body
      %s20 = ssub.s32 %s15, 1
      %s21 = ssub.s32 %s15, 2
      %s22 = sadd.s32 %s15, 1
      %s23 = ssub.s32 %s15, %s22
      %p24 = scmp.eq.s32.totalorder %s23, 0
      %s26 = sadd.s32 %s25, 1
      %s27 = scalar_select %p24, %s25, %s26
      %p30 = pneg %p24
      %p31 = scmp.eq.s32.totalorder %s15, 7
      %p32 = por %p30, %p31
      %p33 = scmp.ne.s32.totalorder %s25, %s28
      %p34 = scmp.eq.s32.totalorder %s15, 0
      %p35 = por %p33, %p34
      %p36 = scmp.ne.s32.totalorder %s25, %s28
      %p37 = scmp.eq.s32.totalorder %s20, 7
      %p38 = por %p36, %p37
      %p39 = scmp.ne.s32.totalorder %s28, %s29
      %p40 = scmp.eq.s32.totalorder %s20, 0
      %p41 = por %p39, %p40
      %p42 = scmp.ne.s32.totalorder %s28, %s29
      %p43 = scmp.eq.s32.totalorder %s21, 7
      %p44 = por %p42, %p43
      %p46 = scmp.ne.s32.totalorder %s29, %s45
      %p47 = scmp.eq.s32.totalorder %s21, 0
      %p48 = por %p46, %p47
      %s50 = sadd.s32 %s49, 1
      %p53 = scmp.eq.s32.totalorder %s15, 7
      %p54 = scmp.ne.s32.totalorder %s49, %s51
      %p55 = scmp.eq.s32.totalorder %s15, 0
      %p56 = por %p54, %p55
      %p57 = scmp.ne.s32.totalorder %s49, %s51
      %p58 = scmp.eq.s32.totalorder %s20, 7
      %p59 = por %p57, %p58
      %p60 = scmp.ne.s32.totalorder %s51, %s52
      %p61 = scmp.eq.s32.totalorder %s20, 0
      %p62 = por %p60, %p61
      %p63 = scmp.ne.s32.totalorder %s51, %s52
      %p64 = scmp.eq.s32.totalorder %s21, 7
      %p65 = por %p63, %p64
      %p67 = scmp.ne.s32.totalorder %s52, %s66
      %p68 = scmp.eq.s32.totalorder %s21, 0
      %p69 = por %p67, %p68
      %s70 = ssub.s32 %s15, %s22
      %p71 = scmp.eq.s32.totalorder %s70, 0
      %s73 = sadd.s32 %s72, 1
      %s74 = scalar_select %p71, %s72, %s73
      %p77 = pneg %p71
      %p78 = scmp.eq.s32.totalorder %s15, 7
      %p79 = por %p77, %p78
      %p80 = scmp.ne.s32.totalorder %s72, %s75
      %p81 = scmp.eq.s32.totalorder %s15, 0
      %p82 = por %p80, %p81
      %p83 = scmp.ne.s32.totalorder %s72, %s75
      %p84 = scmp.eq.s32.totalorder %s20, 7
      %p85 = por %p83, %p84
      %p86 = scmp.ne.s32.totalorder %s75, %s76
      %p87 = scmp.eq.s32.totalorder %s20, 0
      %p88 = por %p86, %p87
      %p89 = scmp.ne.s32.totalorder %s75, %s76
      %p90 = scmp.eq.s32.totalorder %s21, 7
      %p91 = por %p89, %p90
      %p93 = scmp.ne.s32.totalorder %s76, %s92
      %p94 = scmp.eq.s32.totalorder %s21, 0
      %p95 = por %p93, %p94
      %s97 = sadd.s32 %s96, 1
      %p100 = scmp.eq.s32.totalorder %s15, 7
      %p101 = scmp.ne.s32.totalorder %s96, %s98
      %p102 = scmp.eq.s32.totalorder %s15, 0
      %p103 = por %p101, %p102
      %p104 = scmp.ne.s32.totalorder %s96, %s98
      %p105 = scmp.eq.s32.totalorder %s20, 7
      %p106 = por %p104, %p105
      %p107 = scmp.ne.s32.totalorder %s98, %s99
      %p108 = scmp.eq.s32.totalorder %s20, 0
      %p109 = por %p107, %p108
      %p110 = scmp.ne.s32.totalorder %s98, %s99
      %p111 = scmp.eq.s32.totalorder %s21, 7
      %p112 = por %p110, %p111
      %p114 = scmp.ne.s32.totalorder %s99, %s113
      %p115 = scmp.eq.s32.totalorder %s21, 0
      %p116 = por %p114, %p115
      %s118 = sadd.s32 %s117, 1
      %p121 = scmp.eq.s32.totalorder %s15, 7
      %p122 = scmp.ne.s32.totalorder %s117, %s119
      %p123 = scmp.eq.s32.totalorder %s15, 0
      %p124 = por %p122, %p123
      %p125 = scmp.ne.s32.totalorder %s117, %s119
      %p126 = scmp.eq.s32.totalorder %s20, 7
      %p127 = por %p125, %p126
      %p128 = scmp.ne.s32.totalorder %s119, %s120
      %p129 = scmp.eq.s32.totalorder %s20, 0
      %p130 = por %p128, %p129
      %p131 = scmp.ne.s32.totalorder %s119, %s120
      %p132 = scmp.eq.s32.totalorder %s21, 7
      %p133 = por %p131, %p132
      %p135 = scmp.ne.s32.totalorder %s120, %s134
      %p136 = scmp.eq.s32.totalorder %s21, 0
      %p137 = por %p135, %p136
      %p138 = scmp.le.s32.totalorder 1, %s15
      %p139 = scmp.lt.s32.totalorder %s15, 9
      %p140 = pnand %p138, %p139
      %p141 = pneg %p140
      // Predicated region
      $region9: #{tpu_custom_call.1} parent=5 // pred_check
        _
      $region10: #{tpu_custom_call.1} parent=5 // pred_check_branch
        %143 = sbr.rel (%p140) target = $region12
      $region11: #{tpu_custom_call.1} parent=5 // pred_region
        %s144 = ssub.s32 %s15, 1
        // Predicated region
        $region13: #{tpu_custom_call.1} parent=11 // pred_check
          %p145 = pneg %p62
        $region14: #{tpu_custom_call.1} parent=11 // pred_check_branch
          %147 = sbr.rel (%p145) target = $region16
        $region15: #{tpu_custom_call.1} parent=11 // pred_region
          _
        $region16: #{tpu_custom_call.1} parent=11 // pred_fallthru
          _
      $region12: #{tpu_custom_call.1} parent=5 // pred_fallthru
        _
      %p148 = scmp.lt.s32.totalorder %s15, 8
      // Predicated region
      $region17: #{tpu_custom_call.1} parent=5 // pred_check
        %p149 = pneg %p148
      $region18: #{tpu_custom_call.1} parent=5 // pred_check_branch
        %151 = sbr.rel (%p149) target = $region20
      $region19: #{tpu_custom_call.1} parent=5 // pred_region
        // Predicated region
        $region21: #{tpu_custom_call.1} parent=19 // pred_check
          %p152 = pneg %p35
        $region22: #{tpu_custom_call.1} parent=19 // pred_check_branch
          %154 = sbr.rel (%p152) target = $region24
        $region23: #{tpu_custom_call.1} parent=19 // pred_region
          %s155 = smul.u32 128, %s15
          %p156 = scmp.lt.s32.totalorder %s155, 1023
          %s157 = scalar_select %p156, %s155, 1023
          %s158 = smul.addr %s157, 4
          %s159 = scalar_lea.vmem %s0, %s158
          %s160 = smul.u32 128, %s15
        $region24: #{tpu_custom_call.1} parent=19 // pred_fallthru
          _
      $region20: #{tpu_custom_call.1} parent=5 // pred_fallthru
        _
      %p161 = scmp.le.s32.totalorder 1, %s15
      %p162 = scmp.lt.s32.totalorder %s15, 9
      %p163 = pnand %p161, %p162
      %p164 = pneg %p163
      // Predicated region
      $region25: #{tpu_custom_call.1} parent=5 // pred_check
        _
      $region26: #{tpu_custom_call.1} parent=5 // pred_check_branch
        %166 = sbr.rel (%p163) target = $region28
      $region27: #{tpu_custom_call.1} parent=5 // pred_region
        %s167 = ssub.s32 %s15, 1
        %s168 = smul.u32 128, %s20
        %p169 = scmp.lt.s32.totalorder %s168, 1023
        %s170 = scalar_select %p169, %s168, 1023
        %s171 = smul.addr %s170, 4
        %s172 = scalar_lea.vmem %s0, %s171
        %p173 = pneg %p41
        %p174 = pneg %p38
        %p175 = pneg %p62
        %p176 = pneg %p59
        %p177 = pneg %p88
        %p178 = pneg %p85
        %s179 = sand.u32 %s75, 1
        %s180 = scalar_lea.sflag [#allocation3], %s179
        %s181 = sand.u32 %s75, 1
        %s182 = smul.addr %s181, 512
        %s183 = scalar_lea.vmem [#allocation2], %s182
        %p184 = pneg %p109
        %p185 = pneg %p106
        %p186 = pneg %p130
        %p187 = pneg %p127
        %s188 = smul.u32 128, %s20
        %p189 = scmp.lt.s32.totalorder %s188, 1023
        %s190 = scalar_select %p189, %s188, 1023
        %s191 = smul.addr %s190, 4
        %s192 = scalar_lea.vmem %s0, %s191
        %s193 = smul.u32 128, %s20
        %s194 = smul.u32 128, %s20
        %v196 = vld [vmem:[%s192] sm:$0xf]
        %v197 = vld [vmem:[%s192 + $0x4] sm:$0xf]
        %v198 = vld [vmem:[%s192 + $0x8] sm:$0xf]
        %v199 = vld [vmem:[%s192 + $0xc] sm:$0xf]
        %v200 = vld [vmem:[%s192 + $0x10] sm:$0xf]
        %v201 = vld [vmem:[%s192 + $0x14] sm:$0xf]
        %v202 = vld [vmem:[%s192 + $0x18] sm:$0xf]
        %v203 = vld [vmem:[%s192 + $0x1c] sm:$0xf]
        %v204 = vld [vmem:[%s192 + $0x20] sm:$0xf]
        %v205 = vld [vmem:[%s192 + $0x24] sm:$0xf]
        %v206 = vld [vmem:[%s192 + $0x28] sm:$0xf]
        %v207 = vld [vmem:[%s192 + $0x2c] sm:$0xf]
        %v208 = vld [vmem:[%s192 + $0x30] sm:$0xf]
        %v209 = vld [vmem:[%s192 + $0x34] sm:$0xf]
        %v210 = vld [vmem:[%s192 + $0x38] sm:$0xf]
        %v211 = vld [vmem:[%s192 + $0x3c] sm:$0xf]
        %v212 = vld [vmem:[%s192 + $0x40] sm:$0xf]
        %v213 = vld [vmem:[%s192 + $0x44] sm:$0xf]
        %v214 = vld [vmem:[%s192 + $0x48] sm:$0xf]
        %v215 = vld [vmem:[%s192 + $0x4c] sm:$0xf]
        %v216 = vld [vmem:[%s192 + $0x50] sm:$0xf]
        %v217 = vld [vmem:[%s192 + $0x54] sm:$0xf]
        %v218 = vld [vmem:[%s192 + $0x58] sm:$0xf]
        %v219 = vld [vmem:[%s192 + $0x5c] sm:$0xf]
        %v220 = vld [vmem:[%s192 + $0x60] sm:$0xf]
        %v221 = vld [vmem:[%s192 + $0x64] sm:$0xf]
        %v222 = vld [vmem:[%s192 + $0x68] sm:$0xf]
        %v223 = vld [vmem:[%s192 + $0x6c] sm:$0xf]
        %v224 = vld [vmem:[%s192 + $0x70] sm:$0xf]
        %v225 = vld [vmem:[%s192 + $0x74] sm:$0xf]
        %v226 = vld [vmem:[%s192 + $0x78] sm:$0xf]
        %v227 = vld [vmem:[%s192 + $0x7c] sm:$0xf]
        %v228 = vld [vmem:[%s192 + $0x80] sm:$0xf]
        %v229 = vld [vmem:[%s192 + $0x84] sm:$0xf]
        %v230 = vld [vmem:[%s192 + $0x88] sm:$0xf]
        %v231 = vld [vmem:[%s192 + $0x8c] sm:$0xf]
        %v232 = vld [vmem:[%s192 + $0x90] sm:$0xf]
        %v233 = vld [vmem:[%s192 + $0x94] sm:$0xf]
        %v234 = vld [vmem:[%s192 + $0x98] sm:$0xf]
        %v235 = vld [vmem:[%s192 + $0x9c] sm:$0xf]
        %v236 = vld [vmem:[%s192 + $0xa0] sm:$0xf]
        %v237 = vld [vmem:[%s192 + $0xa4] sm:$0xf]
        %v238 = vld [vmem:[%s192 + $0xa8] sm:$0xf]
        %v239 = vld [vmem:[%s192 + $0xac] sm:$0xf]
        %v240 = vld [vmem:[%s192 + $0xb0] sm:$0xf]
        %v241 = vld [vmem:[%s192 + $0xb4] sm:$0xf]
        %v242 = vld [vmem:[%s192 + $0xb8] sm:$0xf]
        %v243 = vld [vmem:[%s192 + $0xbc] sm:$0xf]
        %v244 = vld [vmem:[%s192 + $0xc0] sm:$0xf]
        %v245 = vld [vmem:[%s192 + $0xc4] sm:$0xf]
        %v246 = vld [vmem:[%s192 + $0xc8] sm:$0xf]
        %v247 = vld [vmem:[%s192 + $0xcc] sm:$0xf]
        %v248 = vld [vmem:[%s192 + $0xd0] sm:$0xf]
        %v249 = vld [vmem:[%s192 + $0xd4] sm:$0xf]
        %v250 = vld [vmem:[%s192 + $0xd8] sm:$0xf]
        %v251 = vld [vmem:[%s192 + $0xdc] sm:$0xf]
        %v252 = vld [vmem:[%s192 + $0xe0] sm:$0xf]
        %v253 = vld [vmem:[%s192 + $0xe4] sm:$0xf]
        %v254 = vld [vmem:[%s192 + $0xe8] sm:$0xf]
        %v255 = vld [vmem:[%s192 + $0xec] sm:$0xf]
        %v256 = vld [vmem:[%s192 + $0xf0] sm:$0xf]
        %v257 = vld [vmem:[%s192 + $0xf4] sm:$0xf]
        %v258 = vld [vmem:[%s192 + $0xf8] sm:$0xf]
        %v259 = vld [vmem:[%s192 + $0xfc] sm:$0xf]
        %v260 = vld [vmem:[%s192 + $0x100] sm:$0xf]
        %v261 = vld [vmem:[%s192 + $0x104] sm:$0xf]
        %v262 = vld [vmem:[%s192 + $0x108] sm:$0xf]
        %v263 = vld [vmem:[%s192 + $0x10c] sm:$0xf]
        %v264 = vld [vmem:[%s192 + $0x110] sm:$0xf]
        %v265 = vld [vmem:[%s192 + $0x114] sm:$0xf]
        %v266 = vld [vmem:[%s192 + $0x118] sm:$0xf]
        %v267 = vld [vmem:[%s192 + $0x11c] sm:$0xf]
        %v268 = vld [vmem:[%s192 + $0x120] sm:$0xf]
        %v269 = vld [vmem:[%s192 + $0x124] sm:$0xf]
        %v270 = vld [vmem:[%s192 + $0x128] sm:$0xf]
        %v271 = vld [vmem:[%s192 + $0x12c] sm:$0xf]
        %v272 = vld [vmem:[%s192 + $0x130] sm:$0xf]
        %v273 = vld [vmem:[%s192 + $0x134] sm:$0xf]
        %v274 = vld [vmem:[%s192 + $0x138] sm:$0xf]
        %v275 = vld [vmem:[%s192 + $0x13c] sm:$0xf]
        %v276 = vld [vmem:[%s192 + $0x140] sm:$0xf]
        %v277 = vld [vmem:[%s192 + $0x144] sm:$0xf]
        %v278 = vld [vmem:[%s192 + $0x148] sm:$0xf]
        %v279 = vld [vmem:[%s192 + $0x14c] sm:$0xf]
        %v280 = vld [vmem:[%s192 + $0x150] sm:$0xf]
        %v281 = vld [vmem:[%s192 + $0x154] sm:$0xf]
        %v282 = vld [vmem:[%s192 + $0x158] sm:$0xf]
        %v283 = vld [vmem:[%s192 + $0x15c] sm:$0xf]
        %v284 = vld [vmem:[%s192 + $0x160] sm:$0xf]
        %v285 = vld [vmem:[%s192 + $0x164] sm:$0xf]
        %v286 = vld [vmem:[%s192 + $0x168] sm:$0xf]
        %v287 = vld [vmem:[%s192 + $0x16c] sm:$0xf]
        %v288 = vld [vmem:[%s192 + $0x170] sm:$0xf]
        %v289 = vld [vmem:[%s192 + $0x174] sm:$0xf]
        %v290 = vld [vmem:[%s192 + $0x178] sm:$0xf]
        %v291 = vld [vmem:[%s192 + $0x17c] sm:$0xf]
        %v292 = vld [vmem:[%s192 + $0x180] sm:$0xf]
        %v293 = vld [vmem:[%s192 + $0x184] sm:$0xf]
        %v294 = vld [vmem:[%s192 + $0x188] sm:$0xf]
        %v295 = vld [vmem:[%s192 + $0x18c] sm:$0xf]
        %v296 = vld [vmem:[%s192 + $0x190] sm:$0xf]
        %v297 = vld [vmem:[%s192 + $0x194] sm:$0xf]
        %v298 = vld [vmem:[%s192 + $0x198] sm:$0xf]
        %v299 = vld [vmem:[%s192 + $0x19c] sm:$0xf]
        %v300 = vld [vmem:[%s192 + $0x1a0] sm:$0xf]
        %v301 = vld [vmem:[%s192 + $0x1a4] sm:$0xf]
        %v302 = vld [vmem:[%s192 + $0x1a8] sm:$0xf]
        %v303 = vld [vmem:[%s192 + $0x1ac] sm:$0xf]
        %v304 = vld [vmem:[%s192 + $0x1b0] sm:$0xf]
        %v305 = vld [vmem:[%s192 + $0x1b4] sm:$0xf]
        %v306 = vld [vmem:[%s192 + $0x1b8] sm:$0xf]
        %v307 = vld [vmem:[%s192 + $0x1bc] sm:$0xf]
        %v308 = vld [vmem:[%s192 + $0x1c0] sm:$0xf]
        %v309 = vld [vmem:[%s192 + $0x1c4] sm:$0xf]
        %v310 = vld [vmem:[%s192 + $0x1c8] sm:$0xf]
        %v311 = vld [vmem:[%s192 + $0x1cc] sm:$0xf]
        %v312 = vld [vmem:[%s192 + $0x1d0] sm:$0xf]
        %v313 = vld [vmem:[%s192 + $0x1d4] sm:$0xf]
        %v314 = vld [vmem:[%s192 + $0x1d8] sm:$0xf]
        %v315 = vld [vmem:[%s192 + $0x1dc] sm:$0xf]
        %v316 = vld [vmem:[%s192 + $0x1e0] sm:$0xf]
        %v317 = vld [vmem:[%s192 + $0x1e4] sm:$0xf]
        %v318 = vld [vmem:[%s192 + $0x1e8] sm:$0xf]
        %v319 = vld [vmem:[%s192 + $0x1ec] sm:$0xf]
        %v320 = vld [vmem:[%s192 + $0x1f0] sm:$0xf]
        %v321 = vld [vmem:[%s192 + $0x1f4] sm:$0xf]
        %v322 = vld [vmem:[%s192 + $0x1f8] sm:$0xf]
        %v323 = vld [vmem:[%s192 + $0x1fc] sm:$0xf]
        %v324 = vld [vmem:[%s1] sm:$0xf]
        %v325 = vld [vmem:[%s1 + $0x4] sm:$0xf]
        %v326 = vld [vmem:[%s1 + $0x8] sm:$0xf]
        %v327 = vld [vmem:[%s1 + $0xc] sm:$0xf]
        %v328 = vld [vmem:[%s1 + $0x10] sm:$0xf]
        %v329 = vld [vmem:[%s1 + $0x14] sm:$0xf]
        %v458 = vunpack.c.l.b16 %v196
        %v459 = vunpack.c.l.b16 %v197
        %v460 = vunpack.c.l.b16 %v198
        %v461 = vunpack.c.l.b16 %v199
        %v462 = vunpack.c.l.b16 %v200
        %v463 = vunpack.c.l.b16 %v201
        %v464 = vunpack.c.l.b16 %v202
        %v465 = vunpack.c.l.b16 %v203
        %v466 = vunpack.c.l.b16 %v204
        %v467 = vunpack.c.l.b16 %v205
        %v468 = vunpack.c.l.b16 %v206
        %v469 = vunpack.c.l.b16 %v207
        %v470 = vunpack.c.l.b16 %v208
        %v471 = vunpack.c.l.b16 %v209
        %v472 = vunpack.c.l.b16 %v210
        %v473 = vunpack.c.l.b16 %v211
        %v474 = vunpack.c.l.b16 %v212
        %v475 = vunpack.c.l.b16 %v213
        %v476 = vunpack.c.l.b16 %v214
        %v477 = vunpack.c.l.b16 %v215
        %v478 = vunpack.c.l.b16 %v216
        %v479 = vunpack.c.l.b16 %v217
        %v480 = vunpack.c.l.b16 %v218
        %v481 = vunpack.c.l.b16 %v219
        %v482 = vunpack.c.l.b16 %v220
        %v483 = vunpack.c.l.b16 %v221
        %v484 = vunpack.c.l.b16 %v222
        %v485 = vunpack.c.l.b16 %v223
        %v486 = vunpack.c.l.b16 %v224
        %v487 = vunpack.c.l.b16 %v225
        %v488 = vunpack.c.l.b16 %v226
        %v489 = vunpack.c.l.b16 %v227
        %v490 = vunpack.c.l.b16 %v228
        %v491 = vunpack.c.l.b16 %v229
        %v492 = vunpack.c.l.b16 %v230
        %v493 = vunpack.c.l.b16 %v231
        %v494 = vunpack.c.l.b16 %v232
        %v495 = vunpack.c.l.b16 %v233
        %v496 = vunpack.c.l.b16 %v234
        %v497 = vunpack.c.l.b16 %v235
        %v498 = vunpack.c.l.b16 %v236
        %v499 = vunpack.c.l.b16 %v237
        %v500 = vunpack.c.l.b16 %v238
        %v501 = vunpack.c.l.b16 %v239
        %v502 = vunpack.c.l.b16 %v240
        %v503 = vunpack.c.l.b16 %v241
        %v504 = vunpack.c.l.b16 %v242
        %v505 = vunpack.c.l.b16 %v243
        %v506 = vunpack.c.l.b16 %v244
        %v507 = vunpack.c.l.b16 %v245
        %v508 = vunpack.c.l.b16 %v246
        %v509 = vunpack.c.l.b16 %v247
        %v510 = vunpack.c.l.b16 %v248
        %v511 = vunpack.c.l.b16 %v249
        %v512 = vunpack.c.l.b16 %v250
        %v513 = vunpack.c.l.b16 %v251
        %v514 = vunpack.c.l.b16 %v252
        %v515 = vunpack.c.l.b16 %v253
        %v516 = vunpack.c.l.b16 %v254
        %v517 = vunpack.c.l.b16 %v255
        %v518 = vunpack.c.l.b16 %v256
        %v519 = vunpack.c.l.b16 %v257
        %v520 = vunpack.c.l.b16 %v258
        %v521 = vunpack.c.l.b16 %v259
        %v522 = vunpack.c.l.b16 %v260
        %v523 = vunpack.c.l.b16 %v261
        %v524 = vunpack.c.l.b16 %v262
        %v525 = vunpack.c.l.b16 %v263
        %v526 = vunpack.c.l.b16 %v264
        %v527 = vunpack.c.l.b16 %v265
        %v528 = vunpack.c.l.b16 %v266
        %v529 = vunpack.c.l.b16 %v267
        %v530 = vunpack.c.l.b16 %v268
        %v531 = vunpack.c.l.b16 %v269
        %v532 = vunpack.c.l.b16 %v270
        %v533 = vunpack.c.l.b16 %v271
        %v534 = vunpack.c.l.b16 %v272
        %v535 = vunpack.c.l.b16 %v273
        %v536 = vunpack.c.l.b16 %v274
        %v537 = vunpack.c.l.b16 %v275
        %v538 = vunpack.c.l.b16 %v276
        %v539 = vunpack.c.l.b16 %v277
        %v540 = vunpack.c.l.b16 %v278
        %v541 = vunpack.c.l.b16 %v279
        %v542 = vunpack.c.l.b16 %v280
        %v543 = vunpack.c.l.b16 %v281
        %v544 = vunpack.c.l.b16 %v282
        %v545 = vunpack.c.l.b16 %v283
        %v546 = vunpack.c.l.b16 %v284
        %v547 = vunpack.c.l.b16 %v285
        %v548 = vunpack.c.l.b16 %v286
        %v549 = vunpack.c.l.b16 %v287
        %v550 = vunpack.c.l.b16 %v288
        %v551 = vunpack.c.l.b16 %v289
        %v552 = vunpack.c.l.b16 %v290
        %v553 = vunpack.c.l.b16 %v291
        %v554 = vunpack.c.l.b16 %v292
        %v555 = vunpack.c.l.b16 %v293
        %v556 = vunpack.c.l.b16 %v294
        %v557 = vunpack.c.l.b16 %v295
        %v558 = vunpack.c.l.b16 %v296
        %v559 = vunpack.c.l.b16 %v297
        %v560 = vunpack.c.l.b16 %v298
        %v561 = vunpack.c.l.b16 %v299
        %v562 = vunpack.c.l.b16 %v300
        %v563 = vunpack.c.l.b16 %v301
        %v564 = vunpack.c.l.b16 %v302
        %v565 = vunpack.c.l.b16 %v303
        %v566 = vunpack.c.l.b16 %v304
        %v567 = vunpack.c.l.b16 %v305
        %v568 = vunpack.c.l.b16 %v306
        %v569 = vunpack.c.l.b16 %v307
        %v570 = vunpack.c.l.b16 %v308
        %v571 = vunpack.c.l.b16 %v309
        %v572 = vunpack.c.l.b16 %v310
        %v573 = vunpack.c.l.b16 %v311
        %v574 = vunpack.c.l.b16 %v312
        %v575 = vunpack.c.l.b16 %v313
        %v576 = vunpack.c.l.b16 %v314
        %v577 = vunpack.c.l.b16 %v315
        %v578 = vunpack.c.l.b16 %v316
        %v579 = vunpack.c.l.b16 %v317
        %v580 = vunpack.c.l.b16 %v318
        %v581 = vunpack.c.l.b16 %v319
        %v582 = vunpack.c.l.b16 %v320
        %v583 = vunpack.c.l.b16 %v321
        %v584 = vunpack.c.l.b16 %v322
        %v585 = vunpack.c.l.b16 %v323
        %v586 = vpack.c.b16 %v459, %v458
        %v587 = vpack.c.b16 %v461, %v460
        %v588 = vpack.c.b16 %v463, %v462
        %v589 = vpack.c.b16 %v465, %v464
        %v590 = vpack.c.b16 %v467, %v466
        %v591 = vpack.c.b16 %v469, %v468
        %v592 = vpack.c.b16 %v471, %v470
        %v593 = vpack.c.b16 %v473, %v472
        %v594 = vpack.c.b16 %v475, %v474
        %v595 = vpack.c.b16 %v477, %v476
        %v596 = vpack.c.b16 %v479, %v478
        %v597 = vpack.c.b16 %v481, %v480
        %v598 = vpack.c.b16 %v483, %v482
        %v599 = vpack.c.b16 %v485, %v484
        %v600 = vpack.c.b16 %v487, %v486
        %v601 = vpack.c.b16 %v489, %v488
        %v602 = vpack.c.b16 %v491, %v490
        %v603 = vpack.c.b16 %v493, %v492
        %v604 = vpack.c.b16 %v495, %v494
        %v605 = vpack.c.b16 %v497, %v496
        %v606 = vpack.c.b16 %v499, %v498
        %v607 = vpack.c.b16 %v501, %v500
        %v608 = vpack.c.b16 %v503, %v502
        %v609 = vpack.c.b16 %v505, %v504
        %v610 = vpack.c.b16 %v507, %v506
        %v611 = vpack.c.b16 %v509, %v508
        %v612 = vpack.c.b16 %v511, %v510
        %v613 = vpack.c.b16 %v513, %v512
        %v614 = vpack.c.b16 %v515, %v514
        %v615 = vpack.c.b16 %v517, %v516
        %v616 = vpack.c.b16 %v519, %v518
        %v617 = vpack.c.b16 %v521, %v520
        %v618 = vpack.c.b16 %v523, %v522
        %v619 = vpack.c.b16 %v525, %v524
        %v620 = vpack.c.b16 %v527, %v526
        %v621 = vpack.c.b16 %v529, %v528
        %v622 = vpack.c.b16 %v531, %v530
        %v623 = vpack.c.b16 %v533, %v532
        %v624 = vpack.c.b16 %v535, %v534
        %v625 = vpack.c.b16 %v537, %v536
        %v626 = vpack.c.b16 %v539, %v538
        %v627 = vpack.c.b16 %v541, %v540
        %v628 = vpack.c.b16 %v543, %v542
        %v629 = vpack.c.b16 %v545, %v544
        %v630 = vpack.c.b16 %v547, %v546
        %v631 = vpack.c.b16 %v549, %v548
        %v632 = vpack.c.b16 %v551, %v550
        %v633 = vpack.c.b16 %v553, %v552
        %v634 = vpack.c.b16 %v555, %v554
        %v635 = vpack.c.b16 %v557, %v556
        %v636 = vpack.c.b16 %v559, %v558
        %v637 = vpack.c.b16 %v561, %v560
        %v638 = vpack.c.b16 %v563, %v562
        %v639 = vpack.c.b16 %v565, %v564
        %v640 = vpack.c.b16 %v567, %v566
        %v641 = vpack.c.b16 %v569, %v568
        %v642 = vpack.c.b16 %v571, %v570
        %v643 = vpack.c.b16 %v573, %v572
        %v644 = vpack.c.b16 %v575, %v574
        %v645 = vpack.c.b16 %v577, %v576
        %v646 = vpack.c.b16 %v579, %v578
        %v647 = vpack.c.b16 %v581, %v580
        %v648 = vpack.c.b16 %v583, %v582
        %v649 = vpack.c.b16 %v585, %v584
        %v656 = vunpack.c.l.b16 %v324
        %v657 = vunpack.c.l.b16 %v325
        %v658 = vunpack.c.l.b16 %v326
        %v659 = vunpack.c.l.b16 %v327
        %v660 = vunpack.c.l.b16 %v328
        %v661 = vunpack.c.l.b16 %v329
        %v662 = vpack.c.b16 %v657, %v656
        %v663 = vpack.c.b16 %v659, %v658
        %v664 = vpack.c.b16 %v661, %v660
        %vm668 = vcmask 392192
        %v670 = vsel %vm668, %v586, 0
        %v673 = vsel %vm668, %v587, 0
        %v676 = vsel %vm668, %v588, 0
        %v679 = vsel %vm668, %v589, 0
        %v682 = vsel %vm668, %v590, 0
        %v685 = vsel %vm668, %v591, 0
        %v688 = vsel %vm668, %v592, 0
        %v691 = vsel %vm668, %v593, 0
        %v694 = vsel %vm668, %v594, 0
        %v697 = vsel %vm668, %v595, 0
        %v700 = vsel %vm668, %v596, 0
        %v703 = vsel %vm668, %v597, 0
        %v706 = vsel %vm668, %v598, 0
        %v709 = vsel %vm668, %v599, 0
        %v712 = vsel %vm668, %v600, 0
        %v715 = vsel %vm668, %v601, 0
        %v718 = vsel %vm668, %v602, 0
        %v721 = vsel %vm668, %v603, 0
        %v724 = vsel %vm668, %v604, 0
        %v727 = vsel %vm668, %v605, 0
        %v730 = vsel %vm668, %v606, 0
        %v733 = vsel %vm668, %v607, 0
        %v736 = vsel %vm668, %v608, 0
        %v739 = vsel %vm668, %v609, 0
        %v742 = vsel %vm668, %v610, 0
        %v745 = vsel %vm668, %v611, 0
        %v748 = vsel %vm668, %v612, 0
        %v751 = vsel %vm668, %v613, 0
        %v754 = vsel %vm668, %v614, 0
        %v757 = vsel %vm668, %v615, 0
        %v760 = vsel %vm668, %v616, 0
        %v763 = vsel %vm668, %v617, 0
        %v766 = vsel %vm668, %v618, 0
        %v769 = vsel %vm668, %v619, 0
        %v772 = vsel %vm668, %v620, 0
        %v775 = vsel %vm668, %v621, 0
        %v778 = vsel %vm668, %v622, 0
        %v781 = vsel %vm668, %v623, 0
        %v784 = vsel %vm668, %v624, 0
        %v787 = vsel %vm668, %v625, 0
        %v790 = vsel %vm668, %v626, 0
        %v793 = vsel %vm668, %v627, 0
        %v796 = vsel %vm668, %v628, 0
        %v799 = vsel %vm668, %v629, 0
        %v802 = vsel %vm668, %v630, 0
        %v805 = vsel %vm668, %v631, 0
        %v808 = vsel %vm668, %v632, 0
        %v811 = vsel %vm668, %v633, 0
        %v814 = vsel %vm668, %v634, 0
        %v817 = vsel %vm668, %v635, 0
        %v820 = vsel %vm668, %v636, 0
        %v823 = vsel %vm668, %v637, 0
        %v826 = vsel %vm668, %v638, 0
        %v829 = vsel %vm668, %v639, 0
        %v832 = vsel %vm668, %v640, 0
        %v835 = vsel %vm668, %v641, 0
        %v838 = vsel %vm668, %v642, 0
        %v841 = vsel %vm668, %v643, 0
        %v844 = vsel %vm668, %v644, 0
        %v847 = vsel %vm668, %v645, 0
        %v850 = vsel %vm668, %v646, 0
        %v853 = vsel %vm668, %v647, 0
        %v856 = vsel %vm668, %v648, 0
        %v859 = vsel %vm668, %v649, 0
        %861 = vmatpush.bf16.msra.mxu0 0
        %862 = vmatpush.bf16.msra.mxu0 0
        %863 = vmatpush.bf16.msra.mxu0 0
        %864 = vmatpush.bf16.msra.mxu0 0
        %865 = vmatpush.bf16.msra.mxu0 0
        %866 = vmatpush.bf16.msra.mxu0 %v664
        %867 = vmatpush.bf16.msra.mxu0 %v663
        %868 = vmatpush.bf16.msra.mxu0 %v662
        %869 = vmatmul.bf16.gmra.mxu0 %v670
        %v870 = vpop.f32.mrf.mxu0
        %v871 = vadd.f32 0.0, %v870
        %v872 = vpop.f32.mrf.mxu0
        %v873 = vadd.f32 0.0, %v872
        %874 = vmatmul.bf16.gmra.mxu0 %v673
        %v875 = vpop.f32.mrf.mxu0
        %v876 = vadd.f32 0.0, %v875
        %v877 = vpop.f32.mrf.mxu0
        %v878 = vadd.f32 0.0, %v877
        %879 = vmatmul.bf16.gmra.mxu0 %v676
        %v880 = vpop.f32.mrf.mxu0
        %v881 = vadd.f32 0.0, %v880
        %v882 = vpop.f32.mrf.mxu0
        %v883 = vadd.f32 0.0, %v882
        %884 = vmatmul.bf16.gmra.mxu0 %v679
        %v885 = vpop.f32.mrf.mxu0
        %v886 = vadd.f32 0.0, %v885
        %v887 = vpop.f32.mrf.mxu0
        %v888 = vadd.f32 0.0, %v887
        %889 = vmatmul.bf16.gmra.mxu0 %v682
        %v890 = vpop.f32.mrf.mxu0
        %v891 = vadd.f32 0.0, %v890
        %v892 = vpop.f32.mrf.mxu0
        %v893 = vadd.f32 0.0, %v892
        %894 = vmatmul.bf16.gmra.mxu0 %v685
        %v895 = vpop.f32.mrf.mxu0
        %v896 = vadd.f32 0.0, %v895
        %v897 = vpop.f32.mrf.mxu0
        %v898 = vadd.f32 0.0, %v897
        %899 = vmatmul.bf16.gmra.mxu0 %v688
        %v900 = vpop.f32.mrf.mxu0
        %v901 = vadd.f32 0.0, %v900
        %v902 = vpop.f32.mrf.mxu0
        %v903 = vadd.f32 0.0, %v902
        %904 = vmatmul.bf16.gmra.mxu0 %v691
        %v905 = vpop.f32.mrf.mxu0
        %v906 = vadd.f32 0.0, %v905
        %v907 = vpop.f32.mrf.mxu0
        %v908 = vadd.f32 0.0, %v907
        %909 = vmatmul.bf16.gmra.mxu0 %v694
        %v910 = vpop.f32.mrf.mxu0
        %v911 = vadd.f32 0.0, %v910
        %v912 = vpop.f32.mrf.mxu0
        %v913 = vadd.f32 0.0, %v912
        %914 = vmatmul.bf16.gmra.mxu0 %v697
        %v915 = vpop.f32.mrf.mxu0
        %v916 = vadd.f32 0.0, %v915
        %v917 = vpop.f32.mrf.mxu0
        %v918 = vadd.f32 0.0, %v917
        %919 = vmatmul.bf16.gmra.mxu0 %v700
        %v920 = vpop.f32.mrf.mxu0
        %v921 = vadd.f32 0.0, %v920
        %v922 = vpop.f32.mrf.mxu0
        %v923 = vadd.f32 0.0, %v922
        %924 = vmatmul.bf16.gmra.mxu0 %v703
        %v925 = vpop.f32.mrf.mxu0
        %v926 = vadd.f32 0.0, %v925
        %v927 = vpop.f32.mrf.mxu0
        %v928 = vadd.f32 0.0, %v927
        %929 = vmatmul.bf16.gmra.mxu0 %v706
        %v930 = vpop.f32.mrf.mxu0
        %v931 = vadd.f32 0.0, %v930
        %v932 = vpop.f32.mrf.mxu0
        %v933 = vadd.f32 0.0, %v932
        %934 = vmatmul.bf16.gmra.mxu0 %v709
        %v935 = vpop.f32.mrf.mxu0
        %v936 = vadd.f32 0.0, %v935
        %v937 = vpop.f32.mrf.mxu0
        %v938 = vadd.f32 0.0, %v937
        %939 = vmatmul.bf16.gmra.mxu0 %v712
        %v940 = vpop.f32.mrf.mxu0
        %v941 = vadd.f32 0.0, %v940
        %v942 = vpop.f32.mrf.mxu0
        %v943 = vadd.f32 0.0, %v942
        %944 = vmatmul.bf16.gmra.mxu0 %v715
        %v945 = vpop.f32.mrf.mxu0
        %v946 = vadd.f32 0.0, %v945
        %v947 = vpop.f32.mrf.mxu0
        %v948 = vadd.f32 0.0, %v947
        %949 = vmatmul.bf16.gmra.mxu0 %v718
        %v950 = vpop.f32.mrf.mxu0
        %v951 = vadd.f32 0.0, %v950
        %v952 = vpop.f32.mrf.mxu0
        %v953 = vadd.f32 0.0, %v952
        %954 = vmatmul.bf16.gmra.mxu0 %v721
        %v955 = vpop.f32.mrf.mxu0
        %v956 = vadd.f32 0.0, %v955
        %v957 = vpop.f32.mrf.mxu0
        %v958 = vadd.f32 0.0, %v957
        %959 = vmatmul.bf16.gmra.mxu0 %v724
        %v960 = vpop.f32.mrf.mxu0
        %v961 = vadd.f32 0.0, %v960
        %v962 = vpop.f32.mrf.mxu0
        %v963 = vadd.f32 0.0, %v962
        %964 = vmatmul.bf16.gmra.mxu0 %v727
        %v965 = vpop.f32.mrf.mxu0
        %v966 = vadd.f32 0.0, %v965
        %v967 = vpop.f32.mrf.mxu0
        %v968 = vadd.f32 0.0, %v967
        %969 = vmatmul.bf16.gmra.mxu0 %v730
        %v970 = vpop.f32.mrf.mxu0
        %v971 = vadd.f32 0.0, %v970
        %v972 = vpop.f32.mrf.mxu0
        %v973 = vadd.f32 0.0, %v972
        %974 = vmatmul.bf16.gmra.mxu0 %v733
        %v975 = vpop.f32.mrf.mxu0
        %v976 = vadd.f32 0.0, %v975
        %v977 = vpop.f32.mrf.mxu0
        %v978 = vadd.f32 0.0, %v977
        %979 = vmatmul.bf16.gmra.mxu0 %v736
        %v980 = vpop.f32.mrf.mxu0
        %v981 = vadd.f32 0.0, %v980
        %v982 = vpop.f32.mrf.mxu0
        %v983 = vadd.f32 0.0, %v982
        %984 = vmatmul.bf16.gmra.mxu0 %v739
        %v985 = vpop.f32.mrf.mxu0
        %v986 = vadd.f32 0.0, %v985
        %v987 = vpop.f32.mrf.mxu0
        %v988 = vadd.f32 0.0, %v987
        %989 = vmatmul.bf16.gmra.mxu0 %v742
        %v990 = vpop.f32.mrf.mxu0
        %v991 = vadd.f32 0.0, %v990
        %v992 = vpop.f32.mrf.mxu0
        %v993 = vadd.f32 0.0, %v992
        %994 = vmatmul.bf16.gmra.mxu0 %v745
        %v995 = vpop.f32.mrf.mxu0
        %v996 = vadd.f32 0.0, %v995
        %v997 = vpop.f32.mrf.mxu0
        %v998 = vadd.f32 0.0, %v997
        %999 = vmatmul.bf16.gmra.mxu0 %v748
        %v1000 = vpop.f32.mrf.mxu0
        %v1001 = vadd.f32 0.0, %v1000
        %v1002 = vpop.f32.mrf.mxu0
        %v1003 = vadd.f32 0.0, %v1002
        %1004 = vmatmul.bf16.gmra.mxu0 %v751
        %v1005 = vpop.f32.mrf.mxu0
        %v1006 = vadd.f32 0.0, %v1005
        %v1007 = vpop.f32.mrf.mxu0
        %v1008 = vadd.f32 0.0, %v1007
        %1009 = vmatmul.bf16.gmra.mxu0 %v754
        %v1010 = vpop.f32.mrf.mxu0
        %v1011 = vadd.f32 0.0, %v1010
        %v1012 = vpop.f32.mrf.mxu0
        %v1013 = vadd.f32 0.0, %v1012
        %1014 = vmatmul.bf16.gmra.mxu0 %v757
        %v1015 = vpop.f32.mrf.mxu0
        %v1016 = vadd.f32 0.0, %v1015
        %v1017 = vpop.f32.mrf.mxu0
        %v1018 = vadd.f32 0.0, %v1017
        %1019 = vmatmul.bf16.gmra.mxu0 %v760
        %v1020 = vpop.f32.mrf.mxu0
        %v1021 = vadd.f32 0.0, %v1020
        %v1022 = vpop.f32.mrf.mxu0
        %v1023 = vadd.f32 0.0, %v1022
        %1024 = vmatmul.bf16.gmra.mxu0 %v763
        %v1025 = vpop.f32.mrf.mxu0
        %v1026 = vadd.f32 0.0, %v1025
        %v1027 = vpop.f32.mrf.mxu0
        %v1028 = vadd.f32 0.0, %v1027
        %1029 = vmatmul.bf16.gmra.mxu0 %v766
        %v1030 = vpop.f32.mrf.mxu0
        %v1031 = vadd.f32 0.0, %v1030
        %v1032 = vpop.f32.mrf.mxu0
        %v1033 = vadd.f32 0.0, %v1032
        %1034 = vmatmul.bf16.gmra.mxu0 %v769
        %v1035 = vpop.f32.mrf.mxu0
        %v1036 = vadd.f32 0.0, %v1035
        %v1037 = vpop.f32.mrf.mxu0
        %v1038 = vadd.f32 0.0, %v1037
        %1039 = vmatmul.bf16.gmra.mxu0 %v772
        %v1040 = vpop.f32.mrf.mxu0
        %v1041 = vadd.f32 0.0, %v1040
        %v1042 = vpop.f32.mrf.mxu0
        %v1043 = vadd.f32 0.0, %v1042
        %1044 = vmatmul.bf16.gmra.mxu0 %v775
        %v1045 = vpop.f32.mrf.mxu0
        %v1046 = vadd.f32 0.0, %v1045
        %v1047 = vpop.f32.mrf.mxu0
        %v1048 = vadd.f32 0.0, %v1047
        %1049 = vmatmul.bf16.gmra.mxu0 %v778
        %v1050 = vpop.f32.mrf.mxu0
        %v1051 = vadd.f32 0.0, %v1050
        %v1052 = vpop.f32.mrf.mxu0
        %v1053 = vadd.f32 0.0, %v1052
        %1054 = vmatmul.bf16.gmra.mxu0 %v781
        %v1055 = vpop.f32.mrf.mxu0
        %v1056 = vadd.f32 0.0, %v1055
        %v1057 = vpop.f32.mrf.mxu0
        %v1058 = vadd.f32 0.0, %v1057
        %1059 = vmatmul.bf16.gmra.mxu0 %v784
        %v1060 = vpop.f32.mrf.mxu0
        %v1061 = vadd.f32 0.0, %v1060
        %v1062 = vpop.f32.mrf.mxu0
        %v1063 = vadd.f32 0.0, %v1062
        %1064 = vmatmul.bf16.gmra.mxu0 %v787
        %v1065 = vpop.f32.mrf.mxu0
        %v1066 = vadd.f32 0.0, %v1065
        %v1067 = vpop.f32.mrf.mxu0
        %v1068 = vadd.f32 0.0, %v1067
        %1069 = vmatmul.bf16.gmra.mxu0 %v790
        %v1070 = vpop.f32.mrf.mxu0
        %v1071 = vadd.f32 0.0, %v1070
        %v1072 = vpop.f32.mrf.mxu0
        %v1073 = vadd.f32 0.0, %v1072
        %1074 = vmatmul.bf16.gmra.mxu0 %v793
        %v1075 = vpop.f32.mrf.mxu0
        %v1076 = vadd.f32 0.0, %v1075
        %v1077 = vpop.f32.mrf.mxu0
        %v1078 = vadd.f32 0.0, %v1077
        %1079 = vmatmul.bf16.gmra.mxu0 %v796
        %v1080 = vpop.f32.mrf.mxu0
        %v1081 = vadd.f32 0.0, %v1080
        %v1082 = vpop.f32.mrf.mxu0
        %v1083 = vadd.f32 0.0, %v1082
        %1084 = vmatmul.bf16.gmra.mxu0 %v799
        %v1085 = vpop.f32.mrf.mxu0
        %v1086 = vadd.f32 0.0, %v1085
        %v1087 = vpop.f32.mrf.mxu0
        %v1088 = vadd.f32 0.0, %v1087
        %1089 = vmatmul.bf16.gmra.mxu0 %v802
        %v1090 = vpop.f32.mrf.mxu0
        %v1091 = vadd.f32 0.0, %v1090
        %v1092 = vpop.f32.mrf.mxu0
        %v1093 = vadd.f32 0.0, %v1092
        %1094 = vmatmul.bf16.gmra.mxu0 %v805
        %v1095 = vpop.f32.mrf.mxu0
        %v1096 = vadd.f32 0.0, %v1095
        %v1097 = vpop.f32.mrf.mxu0
        %v1098 = vadd.f32 0.0, %v1097
        %1099 = vmatmul.bf16.gmra.mxu0 %v808
        %v1100 = vpop.f32.mrf.mxu0
        %v1101 = vadd.f32 0.0, %v1100
        %v1102 = vpop.f32.mrf.mxu0
        %v1103 = vadd.f32 0.0, %v1102
        %1104 = vmatmul.bf16.gmra.mxu0 %v811
        %v1105 = vpop.f32.mrf.mxu0
        %v1106 = vadd.f32 0.0, %v1105
        %v1107 = vpop.f32.mrf.mxu0
        %v1108 = vadd.f32 0.0, %v1107
        %1109 = vmatmul.bf16.gmra.mxu0 %v814
        %v1110 = vpop.f32.mrf.mxu0
        %v1111 = vadd.f32 0.0, %v1110
        %v1112 = vpop.f32.mrf.mxu0
        %v1113 = vadd.f32 0.0, %v1112
        %1114 = vmatmul.bf16.gmra.mxu0 %v817
        %v1115 = vpop.f32.mrf.mxu0
        %v1116 = vadd.f32 0.0, %v1115
        %v1117 = vpop.f32.mrf.mxu0
        %v1118 = vadd.f32 0.0, %v1117
        %1119 = vmatmul.bf16.gmra.mxu0 %v820
        %v1120 = vpop.f32.mrf.mxu0
        %v1121 = vadd.f32 0.0, %v1120
        %v1122 = vpop.f32.mrf.mxu0
        %v1123 = vadd.f32 0.0, %v1122
        %1124 = vmatmul.bf16.gmra.mxu0 %v823
        %v1125 = vpop.f32.mrf.mxu0
        %v1126 = vadd.f32 0.0, %v1125
        %v1127 = vpop.f32.mrf.mxu0
        %v1128 = vadd.f32 0.0, %v1127
        %1129 = vmatmul.bf16.gmra.mxu0 %v826
        %v1130 = vpop.f32.mrf.mxu0
        %v1131 = vadd.f32 0.0, %v1130
        %v1132 = vpop.f32.mrf.mxu0
        %v1133 = vadd.f32 0.0, %v1132
        %1134 = vmatmul.bf16.gmra.mxu0 %v829
        %v1135 = vpop.f32.mrf.mxu0
        %v1136 = vadd.f32 0.0, %v1135
        %v1137 = vpop.f32.mrf.mxu0
        %v1138 = vadd.f32 0.0, %v1137
        %1139 = vmatmul.bf16.gmra.mxu0 %v832
        %v1140 = vpop.f32.mrf.mxu0
        %v1141 = vadd.f32 0.0, %v1140
        %v1142 = vpop.f32.mrf.mxu0
        %v1143 = vadd.f32 0.0, %v1142
        %1144 = vmatmul.bf16.gmra.mxu0 %v835
        %v1145 = vpop.f32.mrf.mxu0
        %v1146 = vadd.f32 0.0, %v1145
        %v1147 = vpop.f32.mrf.mxu0
        %v1148 = vadd.f32 0.0, %v1147
        %1149 = vmatmul.bf16.gmra.mxu0 %v838
        %v1150 = vpop.f32.mrf.mxu0
        %v1151 = vadd.f32 0.0, %v1150
        %v1152 = vpop.f32.mrf.mxu0
        %v1153 = vadd.f32 0.0, %v1152
        %1154 = vmatmul.bf16.gmra.mxu0 %v841
        %v1155 = vpop.f32.mrf.mxu0
        %v1156 = vadd.f32 0.0, %v1155
        %v1157 = vpop.f32.mrf.mxu0
        %v1158 = vadd.f32 0.0, %v1157
        %1159 = vmatmul.bf16.gmra.mxu0 %v844
        %v1160 = vpop.f32.mrf.mxu0
        %v1161 = vadd.f32 0.0, %v1160
        %v1162 = vpop.f32.mrf.mxu0
        %v1163 = vadd.f32 0.0, %v1162
        %1164 = vmatmul.bf16.gmra.mxu0 %v847
        %v1165 = vpop.f32.mrf.mxu0
        %v1166 = vadd.f32 0.0, %v1165
        %v1167 = vpop.f32.mrf.mxu0
        %v1168 = vadd.f32 0.0, %v1167
        %1169 = vmatmul.bf16.gmra.mxu0 %v850
        %v1170 = vpop.f32.mrf.mxu0
        %v1171 = vadd.f32 0.0, %v1170
        %v1172 = vpop.f32.mrf.mxu0
        %v1173 = vadd.f32 0.0, %v1172
        %1174 = vmatmul.bf16.gmra.mxu0 %v853
        %v1175 = vpop.f32.mrf.mxu0
        %v1176 = vadd.f32 0.0, %v1175
        %v1177 = vpop.f32.mrf.mxu0
        %v1178 = vadd.f32 0.0, %v1177
        %1179 = vmatmul.bf16.gmra.mxu0 %v856
        %v1180 = vpop.f32.mrf.mxu0
        %v1181 = vadd.f32 0.0, %v1180
        %v1182 = vpop.f32.mrf.mxu0
        %v1183 = vadd.f32 0.0, %v1182
        %1184 = vmatmul.bf16.gmra.mxu0 %v859
        %v1185 = vpop.f32.mrf.mxu0
        %v1186 = vadd.f32 0.0, %v1185
        %v1187 = vpop.f32.mrf.mxu0
        %v1188 = vadd.f32 0.0, %v1187
        %1189 = vdwg.mxu0
        %v1190 = vpack.c.bf16 %v871, %v871
        %v1191 = vpack.c.bf16 %v873, %v873
        %v1192 = vpack.c.bf16 %v876, %v876
        %v1193 = vpack.c.bf16 %v878, %v878
        %v1194 = vpack.c.bf16 %v881, %v881
        %v1195 = vpack.c.bf16 %v883, %v883
        %v1196 = vpack.c.bf16 %v886, %v886
        %v1197 = vpack.c.bf16 %v888, %v888
        %v1198 = vpack.c.bf16 %v891, %v891
        %v1199 = vpack.c.bf16 %v893, %v893
        %v1200 = vpack.c.bf16 %v896, %v896
        %v1201 = vpack.c.bf16 %v898, %v898
        %v1202 = vpack.c.bf16 %v901, %v901
        %v1203 = vpack.c.bf16 %v903, %v903
        %v1204 = vpack.c.bf16 %v906, %v906
        %v1205 = vpack.c.bf16 %v908, %v908
        %v1206 = vpack.c.bf16 %v911, %v911
        %v1207 = vpack.c.bf16 %v913, %v913
        %v1208 = vpack.c.bf16 %v916, %v916
        %v1209 = vpack.c.bf16 %v918, %v918
        %v1210 = vpack.c.bf16 %v921, %v921
        %v1211 = vpack.c.bf16 %v923, %v923
        %v1212 = vpack.c.bf16 %v926, %v926
        %v1213 = vpack.c.bf16 %v928, %v928
        %v1214 = vpack.c.bf16 %v931, %v931
        %v1215 = vpack.c.bf16 %v933, %v933
        %v1216 = vpack.c.bf16 %v936, %v936
        %v1217 = vpack.c.bf16 %v938, %v938
        %v1218 = vpack.c.bf16 %v941, %v941
        %v1219 = vpack.c.bf16 %v943, %v943
        %v1220 = vpack.c.bf16 %v946, %v946
        %v1221 = vpack.c.bf16 %v948, %v948
        %v1222 = vpack.c.bf16 %v951, %v951
        %v1223 = vpack.c.bf16 %v953, %v953
        %v1224 = vpack.c.bf16 %v956, %v956
        %v1225 = vpack.c.bf16 %v958, %v958
        %v1226 = vpack.c.bf16 %v961, %v961
        %v1227 = vpack.c.bf16 %v963, %v963
        %v1228 = vpack.c.bf16 %v966, %v966
        %v1229 = vpack.c.bf16 %v968, %v968
        %v1230 = vpack.c.bf16 %v971, %v971
        %v1231 = vpack.c.bf16 %v973, %v973
        %v1232 = vpack.c.bf16 %v976, %v976
        %v1233 = vpack.c.bf16 %v978, %v978
        %v1234 = vpack.c.bf16 %v981, %v981
        %v1235 = vpack.c.bf16 %v983, %v983
        %v1236 = vpack.c.bf16 %v986, %v986
        %v1237 = vpack.c.bf16 %v988, %v988
        %v1238 = vpack.c.bf16 %v991, %v991
        %v1239 = vpack.c.bf16 %v993, %v993
        %v1240 = vpack.c.bf16 %v996, %v996
        %v1241 = vpack.c.bf16 %v998, %v998
        %v1242 = vpack.c.bf16 %v1001, %v1001
        %v1243 = vpack.c.bf16 %v1003, %v1003
        %v1244 = vpack.c.bf16 %v1006, %v1006
        %v1245 = vpack.c.bf16 %v1008, %v1008
        %v1246 = vpack.c.bf16 %v1011, %v1011
        %v1247 = vpack.c.bf16 %v1013, %v1013
        %v1248 = vpack.c.bf16 %v1016, %v1016
        %v1249 = vpack.c.bf16 %v1018, %v1018
        %v1250 = vpack.c.bf16 %v1021, %v1021
        %v1251 = vpack.c.bf16 %v1023, %v1023
        %v1252 = vpack.c.bf16 %v1026, %v1026
        %v1253 = vpack.c.bf16 %v1028, %v1028
        %v1254 = vpack.c.bf16 %v1031, %v1031
        %v1255 = vpack.c.bf16 %v1033, %v1033
        %v1256 = vpack.c.bf16 %v1036, %v1036
        %v1257 = vpack.c.bf16 %v1038, %v1038
        %v1258 = vpack.c.bf16 %v1041, %v1041
        %v1259 = vpack.c.bf16 %v1043, %v1043
        %v1260 = vpack.c.bf16 %v1046, %v1046
        %v1261 = vpack.c.bf16 %v1048, %v1048
        %v1262 = vpack.c.bf16 %v1051, %v1051
        %v1263 = vpack.c.bf16 %v1053, %v1053
        %v1264 = vpack.c.bf16 %v1056, %v1056
        %v1265 = vpack.c.bf16 %v1058, %v1058
        %v1266 = vpack.c.bf16 %v1061, %v1061
        %v1267 = vpack.c.bf16 %v1063, %v1063
        %v1268 = vpack.c.bf16 %v1066, %v1066
        %v1269 = vpack.c.bf16 %v1068, %v1068
        %v1270 = vpack.c.bf16 %v1071, %v1071
        %v1271 = vpack.c.bf16 %v1073, %v1073
        %v1272 = vpack.c.bf16 %v1076, %v1076
        %v1273 = vpack.c.bf16 %v1078, %v1078
        %v1274 = vpack.c.bf16 %v1081, %v1081
        %v1275 = vpack.c.bf16 %v1083, %v1083
        %v1276 = vpack.c.bf16 %v1086, %v1086
        %v1277 = vpack.c.bf16 %v1088, %v1088
        %v1278 = vpack.c.bf16 %v1091, %v1091
        %v1279 = vpack.c.bf16 %v1093, %v1093
        %v1280 = vpack.c.bf16 %v1096, %v1096
        %v1281 = vpack.c.bf16 %v1098, %v1098
        %v1282 = vpack.c.bf16 %v1101, %v1101
        %v1283 = vpack.c.bf16 %v1103, %v1103
        %v1284 = vpack.c.bf16 %v1106, %v1106
        %v1285 = vpack.c.bf16 %v1108, %v1108
        %v1286 = vpack.c.bf16 %v1111, %v1111
        %v1287 = vpack.c.bf16 %v1113, %v1113
        %v1288 = vpack.c.bf16 %v1116, %v1116
        %v1289 = vpack.c.bf16 %v1118, %v1118
        %v1290 = vpack.c.bf16 %v1121, %v1121
        %v1291 = vpack.c.bf16 %v1123, %v1123
        %v1292 = vpack.c.bf16 %v1126, %v1126
        %v1293 = vpack.c.bf16 %v1128, %v1128
        %v1294 = vpack.c.bf16 %v1131, %v1131
        %v1295 = vpack.c.bf16 %v1133, %v1133
        %v1296 = vpack.c.bf16 %v1136, %v1136
        %v1297 = vpack.c.bf16 %v1138, %v1138
        %v1298 = vpack.c.bf16 %v1141, %v1141
        %v1299 = vpack.c.bf16 %v1143, %v1143
        %v1300 = vpack.c.bf16 %v1146, %v1146
        %v1301 = vpack.c.bf16 %v1148, %v1148
        %v1302 = vpack.c.bf16 %v1151, %v1151
        %v1303 = vpack.c.bf16 %v1153, %v1153
        %v1304 = vpack.c.bf16 %v1156, %v1156
        %v1305 = vpack.c.bf16 %v1158, %v1158
        %v1306 = vpack.c.bf16 %v1161, %v1161
        %v1307 = vpack.c.bf16 %v1163, %v1163
        %v1308 = vpack.c.bf16 %v1166, %v1166
        %v1309 = vpack.c.bf16 %v1168, %v1168
        %v1310 = vpack.c.bf16 %v1171, %v1171
        %v1311 = vpack.c.bf16 %v1173, %v1173
        %v1312 = vpack.c.bf16 %v1176, %v1176
        %v1313 = vpack.c.bf16 %v1178, %v1178
        %v1314 = vpack.c.bf16 %v1181, %v1181
        %v1315 = vpack.c.bf16 %v1183, %v1183
        %v1316 = vpack.c.bf16 %v1186, %v1186
        %v1317 = vpack.c.bf16 %v1188, %v1188
        %1318 = vst [vmem:[%s183] sm:$0xf] %v1190
        %1319 = vst [vmem:[%s183 + $0x4] sm:$0xf] %v1191
        %1320 = vst [vmem:[%s183 + $0x8] sm:$0xf] %v1192
        %1321 = vst [vmem:[%s183 + $0xc] sm:$0xf] %v1193
        %1322 = vst [vmem:[%s183 + $0x10] sm:$0xf] %v1194
        %1323 = vst [vmem:[%s183 + $0x14] sm:$0xf] %v1195
        %1324 = vst [vmem:[%s183 + $0x18] sm:$0xf] %v1196
        %1325 = vst [vmem:[%s183 + $0x1c] sm:$0xf] %v1197
        %1326 = vst [vmem:[%s183 + $0x20] sm:$0xf] %v1198
        %1327 = vst [vmem:[%s183 + $0x24] sm:$0xf] %v1199
        %1328 = vst [vmem:[%s183 + $0x28] sm:$0xf] %v1200
        %1329 = vst [vmem:[%s183 + $0x2c] sm:$0xf] %v1201
        %1330 = vst [vmem:[%s183 + $0x30] sm:$0xf] %v1202
        %1331 = vst [vmem:[%s183 + $0x34] sm:$0xf] %v1203
        %1332 = vst [vmem:[%s183 + $0x38] sm:$0xf] %v1204
        %1333 = vst [vmem:[%s183 + $0x3c] sm:$0xf] %v1205
        %1334 = vst [vmem:[%s183 + $0x40] sm:$0xf] %v1206
        %1335 = vst [vmem:[%s183 + $0x44] sm:$0xf] %v1207
        %1336 = vst [vmem:[%s183 + $0x48] sm:$0xf] %v1208
        %1337 = vst [vmem:[%s183 + $0x4c] sm:$0xf] %v1209
        %1338 = vst [vmem:[%s183 + $0x50] sm:$0xf] %v1210
        %1339 = vst [vmem:[%s183 + $0x54] sm:$0xf] %v1211
        %1340 = vst [vmem:[%s183 + $0x58] sm:$0xf] %v1212
        %1341 = vst [vmem:[%s183 + $0x5c] sm:$0xf] %v1213
        %1342 = vst [vmem:[%s183 + $0x60] sm:$0xf] %v1214
        %1343 = vst [vmem:[%s183 + $0x64] sm:$0xf] %v1215
        %1344 = vst [vmem:[%s183 + $0x68] sm:$0xf] %v1216
        %1345 = vst [vmem:[%s183 + $0x6c] sm:$0xf] %v1217
        %1346 = vst [vmem:[%s183 + $0x70] sm:$0xf] %v1218
        %1347 = vst [vmem:[%s183 + $0x74] sm:$0xf] %v1219
        %1348 = vst [vmem:[%s183 + $0x78] sm:$0xf] %v1220
        %1349 = vst [vmem:[%s183 + $0x7c] sm:$0xf] %v1221
        %1350 = vst [vmem:[%s183 + $0x80] sm:$0xf] %v1222
        %1351 = vst [vmem:[%s183 + $0x84] sm:$0xf] %v1223
        %1352 = vst [vmem:[%s183 + $0x88] sm:$0xf] %v1224
        %1353 = vst [vmem:[%s183 + $0x8c] sm:$0xf] %v1225
        %1354 = vst [vmem:[%s183 + $0x90] sm:$0xf] %v1226
        %1355 = vst [vmem:[%s183 + $0x94] sm:$0xf] %v1227
        %1356 = vst [vmem:[%s183 + $0x98] sm:$0xf] %v1228
        %1357 = vst [vmem:[%s183 + $0x9c] sm:$0xf] %v1229
        %1358 = vst [vmem:[%s183 + $0xa0] sm:$0xf] %v1230
        %1359 = vst [vmem:[%s183 + $0xa4] sm:$0xf] %v1231
        %1360 = vst [vmem:[%s183 + $0xa8] sm:$0xf] %v1232
        %1361 = vst [vmem:[%s183 + $0xac] sm:$0xf] %v1233
        %1362 = vst [vmem:[%s183 + $0xb0] sm:$0xf] %v1234
        %1363 = vst [vmem:[%s183 + $0xb4] sm:$0xf] %v1235
        %1364 = vst [vmem:[%s183 + $0xb8] sm:$0xf] %v1236
        %1365 = vst [vmem:[%s183 + $0xbc] sm:$0xf] %v1237
        %1366 = vst [vmem:[%s183 + $0xc0] sm:$0xf] %v1238
        %1367 = vst [vmem:[%s183 + $0xc4] sm:$0xf] %v1239
        %1368 = vst [vmem:[%s183 + $0xc8] sm:$0xf] %v1240
        %1369 = vst [vmem:[%s183 + $0xcc] sm:$0xf] %v1241
        %1370 = vst [vmem:[%s183 + $0xd0] sm:$0xf] %v1242
        %1371 = vst [vmem:[%s183 + $0xd4] sm:$0xf] %v1243
        %1372 = vst [vmem:[%s183 + $0xd8] sm:$0xf] %v1244
        %1373 = vst [vmem:[%s183 + $0xdc] sm:$0xf] %v1245
        %1374 = vst [vmem:[%s183 + $0xe0] sm:$0xf] %v1246
        %1375 = vst [vmem:[%s183 + $0xe4] sm:$0xf] %v1247
        %1376 = vst [vmem:[%s183 + $0xe8] sm:$0xf] %v1248
        %1377 = vst [vmem:[%s183 + $0xec] sm:$0xf] %v1249
        %1378 = vst [vmem:[%s183 + $0xf0] sm:$0xf] %v1250
        %1379 = vst [vmem:[%s183 + $0xf4] sm:$0xf] %v1251
        %1380 = vst [vmem:[%s183 + $0xf8] sm:$0xf] %v1252
        %1381 = vst [vmem:[%s183 + $0xfc] sm:$0xf] %v1253
        %1382 = vst [vmem:[%s183 + $0x100] sm:$0xf] %v1254
        %1383 = vst [vmem:[%s183 + $0x104] sm:$0xf] %v1255
        %1384 = vst [vmem:[%s183 + $0x108] sm:$0xf] %v1256
        %1385 = vst [vmem:[%s183 + $0x10c] sm:$0xf] %v1257
        %1386 = vst [vmem:[%s183 + $0x110] sm:$0xf] %v1258
        %1387 = vst [vmem:[%s183 + $0x114] sm:$0xf] %v1259
        %1388 = vst [vmem:[%s183 + $0x118] sm:$0xf] %v1260
        %1389 = vst [vmem:[%s183 + $0x11c] sm:$0xf] %v1261
        %1390 = vst [vmem:[%s183 + $0x120] sm:$0xf] %v1262
        %1391 = vst [vmem:[%s183 + $0x124] sm:$0xf] %v1263
        %1392 = vst [vmem:[%s183 + $0x128] sm:$0xf] %v1264
        %1393 = vst [vmem:[%s183 + $0x12c] sm:$0xf] %v1265
        %1394 = vst [vmem:[%s183 + $0x130] sm:$0xf] %v1266
        %1395 = vst [vmem:[%s183 + $0x134] sm:$0xf] %v1267
        %1396 = vst [vmem:[%s183 + $0x138] sm:$0xf] %v1268
        %1397 = vst [vmem:[%s183 + $0x13c] sm:$0xf] %v1269
        %1398 = vst [vmem:[%s183 + $0x140] sm:$0xf] %v1270
        %1399 = vst [vmem:[%s183 + $0x144] sm:$0xf] %v1271
        %1400 = vst [vmem:[%s183 + $0x148] sm:$0xf] %v1272
        %1401 = vst [vmem:[%s183 + $0x14c] sm:$0xf] %v1273
        %1402 = vst [vmem:[%s183 + $0x150] sm:$0xf] %v1274
        %1403 = vst [vmem:[%s183 + $0x154] sm:$0xf] %v1275
        %1404 = vst [vmem:[%s183 + $0x158] sm:$0xf] %v1276
        %1405 = vst [vmem:[%s183 + $0x15c] sm:$0xf] %v1277
        %1406 = vst [vmem:[%s183 + $0x160] sm:$0xf] %v1278
        %1407 = vst [vmem:[%s183 + $0x164] sm:$0xf] %v1279
        %1408 = vst [vmem:[%s183 + $0x168] sm:$0xf] %v1280
        %1409 = vst [vmem:[%s183 + $0x16c] sm:$0xf] %v1281
        %1410 = vst [vmem:[%s183 + $0x170] sm:$0xf] %v1282
        %1411 = vst [vmem:[%s183 + $0x174] sm:$0xf] %v1283
        %1412 = vst [vmem:[%s183 + $0x178] sm:$0xf] %v1284
        %1413 = vst [vmem:[%s183 + $0x17c] sm:$0xf] %v1285
        %1414 = vst [vmem:[%s183 + $0x180] sm:$0xf] %v1286
        %1415 = vst [vmem:[%s183 + $0x184] sm:$0xf] %v1287
        %1416 = vst [vmem:[%s183 + $0x188] sm:$0xf] %v1288
        %1417 = vst [vmem:[%s183 + $0x18c] sm:$0xf] %v1289
        %1418 = vst [vmem:[%s183 + $0x190] sm:$0xf] %v1290
        %1419 = vst [vmem:[%s183 + $0x194] sm:$0xf] %v1291
        %1420 = vst [vmem:[%s183 + $0x198] sm:$0xf] %v1292
        %1421 = vst [vmem:[%s183 + $0x19c] sm:$0xf] %v1293
        %1422 = vst [vmem:[%s183 + $0x1a0] sm:$0xf] %v1294
        %1423 = vst [vmem:[%s183 + $0x1a4] sm:$0xf] %v1295
        %1424 = vst [vmem:[%s183 + $0x1a8] sm:$0xf] %v1296
        %1425 = vst [vmem:[%s183 + $0x1ac] sm:$0xf] %v1297
        %1426 = vst [vmem:[%s183 + $0x1b0] sm:$0xf] %v1298
        %1427 = vst [vmem:[%s183 + $0x1b4] sm:$0xf] %v1299
        %1428 = vst [vmem:[%s183 + $0x1b8] sm:$0xf] %v1300
        %1429 = vst [vmem:[%s183 + $0x1bc] sm:$0xf] %v1301
        %1430 = vst [vmem:[%s183 + $0x1c0] sm:$0xf] %v1302
        %1431 = vst [vmem:[%s183 + $0x1c4] sm:$0xf] %v1303
        %1432 = vst [vmem:[%s183 + $0x1c8] sm:$0xf] %v1304
        %1433 = vst [vmem:[%s183 + $0x1cc] sm:$0xf] %v1305
        %1434 = vst [vmem:[%s183 + $0x1d0] sm:$0xf] %v1306
        %1435 = vst [vmem:[%s183 + $0x1d4] sm:$0xf] %v1307
        %1436 = vst [vmem:[%s183 + $0x1d8] sm:$0xf] %v1308
        %1437 = vst [vmem:[%s183 + $0x1dc] sm:$0xf] %v1309
        %1438 = vst [vmem:[%s183 + $0x1e0] sm:$0xf] %v1310
        %1439 = vst [vmem:[%s183 + $0x1e4] sm:$0xf] %v1311
        %1440 = vst [vmem:[%s183 + $0x1e8] sm:$0xf] %v1312
        %1441 = vst [vmem:[%s183 + $0x1ec] sm:$0xf] %v1313
        %1442 = vst [vmem:[%s183 + $0x1f0] sm:$0xf] %v1314
        %1443 = vst [vmem:[%s183 + $0x1f4] sm:$0xf] %v1315
        %1444 = vst [vmem:[%s183 + $0x1f8] sm:$0xf] %v1316
        %1445 = vst [vmem:[%s183 + $0x1fc] sm:$0xf] %v1317
        %p1446 = scmp.eq.s32.totalorder %s20, 0
        // Predicated region
        $region29: #{tpu_custom_call.1} parent=27 // pred_check
          %p1447 = pneg %p1446
        $region30: #{tpu_custom_call.1} parent=27 // pred_check_branch
          %1449 = sbr.rel (%p1447) target = $region32
        $region31: #{tpu_custom_call.1} parent=27 // pred_region
          %1450 = vst [vmem:[#allocation4] sm:$0x1] 0.0
          %1451 = vst [vmem:[#allocation6] sm:$0x1] 0.0
        $region32: #{tpu_custom_call.1} parent=27 // pred_fallthru
          _
        %v1452 = vld [vmem:[#allocation4] sm:$0x1]
        %v1453 = vadd.f32 %v871, %v873
        %v1454 = vadd.f32 %v1453, %v876
        %v1455 = vadd.f32 %v1454, %v878
        %v1456 = vadd.f32 %v1455, %v881
        %v1457 = vadd.f32 %v1456, %v883
        %v1458 = vadd.f32 %v1457, %v886
        %v1459 = vadd.f32 %v1458, %v888
        %v1460 = vadd.f32 %v1459, %v891
        %v1461 = vadd.f32 %v1460, %v893
        %v1462 = vadd.f32 %v1461, %v896
        %v1463 = vadd.f32 %v1462, %v898
        %v1464 = vadd.f32 %v1463, %v901
        %v1465 = vadd.f32 %v1464, %v903
        %v1466 = vadd.f32 %v1465, %v906
        %v1467 = vadd.f32 %v1466, %v908
        %v1468 = vadd.f32 %v1467, %v911
        %v1469 = vadd.f32 %v1468, %v913
        %v1470 = vadd.f32 %v1469, %v916
        %v1471 = vadd.f32 %v1470, %v918
        %v1472 = vadd.f32 %v1471, %v921
        %v1473 = vadd.f32 %v1472, %v923
        %v1474 = vadd.f32 %v1473, %v926
        %v1475 = vadd.f32 %v1474, %v928
        %v1476 = vadd.f32 %v1475, %v931
        %v1477 = vadd.f32 %v1476, %v933
        %v1478 = vadd.f32 %v1477, %v936
        %v1479 = vadd.f32 %v1478, %v938
        %v1480 = vadd.f32 %v1479, %v941
        %v1481 = vadd.f32 %v1480, %v943
        %v1482 = vadd.f32 %v1481, %v946
        %v1483 = vadd.f32 %v1482, %v948
        %v1484 = vadd.f32 %v1483, %v951
        %v1485 = vadd.f32 %v1484, %v953
        %v1486 = vadd.f32 %v1485, %v956
        %v1487 = vadd.f32 %v1486, %v958
        %v1488 = vadd.f32 %v1487, %v961
        %v1489 = vadd.f32 %v1488, %v963
        %v1490 = vadd.f32 %v1489, %v966
        %v1491 = vadd.f32 %v1490, %v968
        %v1492 = vadd.f32 %v1491, %v971
        %v1493 = vadd.f32 %v1492, %v973
        %v1494 = vadd.f32 %v1493, %v976
        %v1495 = vadd.f32 %v1494, %v978
        %v1496 = vadd.f32 %v1495, %v981
        %v1497 = vadd.f32 %v1496, %v983
        %v1498 = vadd.f32 %v1497, %v986
        %v1499 = vadd.f32 %v1498, %v988
        %v1500 = vadd.f32 %v1499, %v991
        %v1501 = vadd.f32 %v1500, %v993
        %v1502 = vadd.f32 %v1501, %v996
        %v1503 = vadd.f32 %v1502, %v998
        %v1504 = vadd.f32 %v1503, %v1001
        %v1505 = vadd.f32 %v1504, %v1003
        %v1506 = vadd.f32 %v1505, %v1006
        %v1507 = vadd.f32 %v1506, %v1008
        %v1508 = vadd.f32 %v1507, %v1011
        %v1509 = vadd.f32 %v1508, %v1013
        %v1510 = vadd.f32 %v1509, %v1016
        %v1511 = vadd.f32 %v1510, %v1018
        %v1512 = vadd.f32 %v1511, %v1021
        %v1513 = vadd.f32 %v1512, %v1023
        %v1514 = vadd.f32 %v1513, %v1026
        %v1515 = vadd.f32 %v1514, %v1028
        %v1516 = vadd.f32 %v1515, %v1031
        %v1517 = vadd.f32 %v1516, %v1033
        %v1518 = vadd.f32 %v1517, %v1036
        %v1519 = vadd.f32 %v1518, %v1038
        %v1520 = vadd.f32 %v1519, %v1041
        %v1521 = vadd.f32 %v1520, %v1043
        %v1522 = vadd.f32 %v1521, %v1046
        %v1523 = vadd.f32 %v1522, %v1048
        %v1524 = vadd.f32 %v1523, %v1051
        %v1525 = vadd.f32 %v1524, %v1053
        %v1526 = vadd.f32 %v1525, %v1056
        %v1527 = vadd.f32 %v1526, %v1058
        %v1528 = vadd.f32 %v1527, %v1061
        %v1529 = vadd.f32 %v1528, %v1063
        %v1530 = vadd.f32 %v1529, %v1066
        %v1531 = vadd.f32 %v1530, %v1068
        %v1532 = vadd.f32 %v1531, %v1071
        %v1533 = vadd.f32 %v1532, %v1073
        %v1534 = vadd.f32 %v1533, %v1076
        %v1535 = vadd.f32 %v1534, %v1078
        %v1536 = vadd.f32 %v1535, %v1081
        %v1537 = vadd.f32 %v1536, %v1083
        %v1538 = vadd.f32 %v1537, %v1086
        %v1539 = vadd.f32 %v1538, %v1088
        %v1540 = vadd.f32 %v1539, %v1091
        %v1541 = vadd.f32 %v1540, %v1093
        %v1542 = vadd.f32 %v1541, %v1096
        %v1543 = vadd.f32 %v1542, %v1098
        %v1544 = vadd.f32 %v1543, %v1101
        %v1545 = vadd.f32 %v1544, %v1103
        %v1546 = vadd.f32 %v1545, %v1106
        %v1547 = vadd.f32 %v1546, %v1108
        %v1548 = vadd.f32 %v1547, %v1111
        %v1549 = vadd.f32 %v1548, %v1113
        %v1550 = vadd.f32 %v1549, %v1116
        %v1551 = vadd.f32 %v1550, %v1118
        %v1552 = vadd.f32 %v1551, %v1121
        %v1553 = vadd.f32 %v1552, %v1123
        %v1554 = vadd.f32 %v1553, %v1126
        %v1555 = vadd.f32 %v1554, %v1128
        %v1556 = vadd.f32 %v1555, %v1131
        %v1557 = vadd.f32 %v1556, %v1133
        %v1558 = vadd.f32 %v1557, %v1136
        %v1559 = vadd.f32 %v1558, %v1138
        %v1560 = vadd.f32 %v1559, %v1141
        %v1561 = vadd.f32 %v1560, %v1143
        %v1562 = vadd.f32 %v1561, %v1146
        %v1563 = vadd.f32 %v1562, %v1148
        %v1564 = vadd.f32 %v1563, %v1151
        %v1565 = vadd.f32 %v1564, %v1153
        %v1566 = vadd.f32 %v1565, %v1156
        %v1567 = vadd.f32 %v1566, %v1158
        %v1568 = vadd.f32 %v1567, %v1161
        %v1569 = vadd.f32 %v1568, %v1163
        %v1570 = vadd.f32 %v1569, %v1166
        %v1571 = vadd.f32 %v1570, %v1168
        %v1572 = vadd.f32 %v1571, %v1171
        %v1573 = vadd.f32 %v1572, %v1173
        %v1574 = vadd.f32 %v1573, %v1176
        %v1575 = vadd.f32 %v1574, %v1178
        %v1576 = vadd.f32 %v1575, %v1181
        %v1577 = vadd.f32 %v1576, %v1183
        %v1578 = vadd.f32 %v1577, %v1186
        %v1579 = vadd.f32 %v1578, %v1188
        %v1580 = vrot.slane %v1579, 4
        %v1581 = vadd.f32 %v1579, %v1580
        %v1582 = vrot.slane %v1581, 2
        %v1583 = vadd.f32 %v1581, %v1582
        %v1584 = vrot.slane %v1583, 1
        %v1585 = vadd.f32 %v1583, %v1584
        %v1586 = vadd.f32 %v1452, %v1585
        %1587 = vst [vmem:[#allocation4] sm:$0x1] %v1586
        %v1588 = vld [vmem:[#allocation6] sm:$0x1]
        %v1589 = vmul.f32 %v871, %v871
        %v1590 = vmul.f32 %v873, %v873
        %v1591 = vmul.f32 %v876, %v876
        %v1592 = vmul.f32 %v878, %v878
        %v1593 = vmul.f32 %v881, %v881
        %v1594 = vmul.f32 %v883, %v883
        %v1595 = vmul.f32 %v886, %v886
        %v1596 = vmul.f32 %v888, %v888
        %v1597 = vmul.f32 %v891, %v891
        %v1598 = vmul.f32 %v893, %v893
        %v1599 = vmul.f32 %v896, %v896
        %v1600 = vmul.f32 %v898, %v898
        %v1601 = vmul.f32 %v901, %v901
        %v1602 = vmul.f32 %v903, %v903
        %v1603 = vmul.f32 %v906, %v906
        %v1604 = vmul.f32 %v908, %v908
        %v1605 = vmul.f32 %v911, %v911
        %v1606 = vmul.f32 %v913, %v913
        %v1607 = vmul.f32 %v916, %v916
        %v1608 = vmul.f32 %v918, %v918
        %v1609 = vmul.f32 %v921, %v921
        %v1610 = vmul.f32 %v923, %v923
        %v1611 = vmul.f32 %v926, %v926
        %v1612 = vmul.f32 %v928, %v928
        %v1613 = vmul.f32 %v931, %v931
        %v1614 = vmul.f32 %v933, %v933
        %v1615 = vmul.f32 %v936, %v936
        %v1616 = vmul.f32 %v938, %v938
        %v1617 = vmul.f32 %v941, %v941
        %v1618 = vmul.f32 %v943, %v943
        %v1619 = vmul.f32 %v946, %v946
        %v1620 = vmul.f32 %v948, %v948
        %v1621 = vmul.f32 %v951, %v951
        %v1622 = vmul.f32 %v953, %v953
        %v1623 = vmul.f32 %v956, %v956
        %v1624 = vmul.f32 %v958, %v958
        %v1625 = vmul.f32 %v961, %v961
        %v1626 = vmul.f32 %v963, %v963
        %v1627 = vmul.f32 %v966, %v966
        %v1628 = vmul.f32 %v968, %v968
        %v1629 = vmul.f32 %v971, %v971
        %v1630 = vmul.f32 %v973, %v973
        %v1631 = vmul.f32 %v976, %v976
        %v1632 = vmul.f32 %v978, %v978
        %v1633 = vmul.f32 %v981, %v981
        %v1634 = vmul.f32 %v983, %v983
        %v1635 = vmul.f32 %v986, %v986
        %v1636 = vmul.f32 %v988, %v988
        %v1637 = vmul.f32 %v991, %v991
        %v1638 = vmul.f32 %v993, %v993
        %v1639 = vmul.f32 %v996, %v996
        %v1640 = vmul.f32 %v998, %v998
        %v1641 = vmul.f32 %v1001, %v1001
        %v1642 = vmul.f32 %v1003, %v1003
        %v1643 = vmul.f32 %v1006, %v1006
        %v1644 = vmul.f32 %v1008, %v1008
        %v1645 = vmul.f32 %v1011, %v1011
        %v1646 = vmul.f32 %v1013, %v1013
        %v1647 = vmul.f32 %v1016, %v1016
        %v1648 = vmul.f32 %v1018, %v1018
        %v1649 = vmul.f32 %v1021, %v1021
        %v1650 = vmul.f32 %v1023, %v1023
        %v1651 = vmul.f32 %v1026, %v1026
        %v1652 = vmul.f32 %v1028, %v1028
        %v1653 = vmul.f32 %v1031, %v1031
        %v1654 = vmul.f32 %v1033, %v1033
        %v1655 = vmul.f32 %v1036, %v1036
        %v1656 = vmul.f32 %v1038, %v1038
        %v1657 = vmul.f32 %v1041, %v1041
        %v1658 = vmul.f32 %v1043, %v1043
        %v1659 = vmul.f32 %v1046, %v1046
        %v1660 = vmul.f32 %v1048, %v1048
        %v1661 = vmul.f32 %v1051, %v1051
        %v1662 = vmul.f32 %v1053, %v1053
        %v1663 = vmul.f32 %v1056, %v1056
        %v1664 = vmul.f32 %v1058, %v1058
        %v1665 = vmul.f32 %v1061, %v1061
        %v1666 = vmul.f32 %v1063, %v1063
        %v1667 = vmul.f32 %v1066, %v1066
        %v1668 = vmul.f32 %v1068, %v1068
        %v1669 = vmul.f32 %v1071, %v1071
        %v1670 = vmul.f32 %v1073, %v1073
        %v1671 = vmul.f32 %v1076, %v1076
        %v1672 = vmul.f32 %v1078, %v1078
        %v1673 = vmul.f32 %v1081, %v1081
        %v1674 = vmul.f32 %v1083, %v1083
        %v1675 = vmul.f32 %v1086, %v1086
        %v1676 = vmul.f32 %v1088, %v1088
        %v1677 = vmul.f32 %v1091, %v1091
        %v1678 = vmul.f32 %v1093, %v1093
        %v1679 = vmul.f32 %v1096, %v1096
        %v1680 = vmul.f32 %v1098, %v1098
        %v1681 = vmul.f32 %v1101, %v1101
        %v1682 = vmul.f32 %v1103, %v1103
        %v1683 = vmul.f32 %v1106, %v1106
        %v1684 = vmul.f32 %v1108, %v1108
        %v1685 = vmul.f32 %v1111, %v1111
        %v1686 = vmul.f32 %v1113, %v1113
        %v1687 = vmul.f32 %v1116, %v1116
        %v1688 = vmul.f32 %v1118, %v1118
        %v1689 = vmul.f32 %v1121, %v1121
        %v1690 = vmul.f32 %v1123, %v1123
        %v1691 = vmul.f32 %v1126, %v1126
        %v1692 = vmul.f32 %v1128, %v1128
        %v1693 = vmul.f32 %v1131, %v1131
        %v1694 = vmul.f32 %v1133, %v1133
        %v1695 = vmul.f32 %v1136, %v1136
        %v1696 = vmul.f32 %v1138, %v1138
        %v1697 = vmul.f32 %v1141, %v1141
        %v1698 = vmul.f32 %v1143, %v1143
        %v1699 = vmul.f32 %v1146, %v1146
        %v1700 = vmul.f32 %v1148, %v1148
        %v1701 = vmul.f32 %v1151, %v1151
        %v1702 = vmul.f32 %v1153, %v1153
        %v1703 = vmul.f32 %v1156, %v1156
        %v1704 = vmul.f32 %v1158, %v1158
        %v1705 = vmul.f32 %v1161, %v1161
        %v1706 = vmul.f32 %v1163, %v1163
        %v1707 = vmul.f32 %v1166, %v1166
        %v1708 = vmul.f32 %v1168, %v1168
        %v1709 = vmul.f32 %v1171, %v1171
        %v1710 = vmul.f32 %v1173, %v1173
        %v1711 = vmul.f32 %v1176, %v1176
        %v1712 = vmul.f32 %v1178, %v1178
        %v1713 = vmul.f32 %v1181, %v1181
        %v1714 = vmul.f32 %v1183, %v1183
        %v1715 = vmul.f32 %v1186, %v1186
        %v1716 = vmul.f32 %v1188, %v1188
        %v1717 = vadd.f32 %v1589, %v1590
        %v1718 = vadd.f32 %v1717, %v1591
        %v1719 = vadd.f32 %v1718, %v1592
        %v1720 = vadd.f32 %v1719, %v1593
        %v1721 = vadd.f32 %v1720, %v1594
        %v1722 = vadd.f32 %v1721, %v1595
        %v1723 = vadd.f32 %v1722, %v1596
        %v1724 = vadd.f32 %v1723, %v1597
        %v1725 = vadd.f32 %v1724, %v1598
        %v1726 = vadd.f32 %v1725, %v1599
        %v1727 = vadd.f32 %v1726, %v1600
        %v1728 = vadd.f32 %v1727, %v1601
        %v1729 = vadd.f32 %v1728, %v1602
        %v1730 = vadd.f32 %v1729, %v1603
        %v1731 = vadd.f32 %v1730, %v1604
        %v1732 = vadd.f32 %v1731, %v1605
        %v1733 = vadd.f32 %v1732, %v1606
        %v1734 = vadd.f32 %v1733, %v1607
        %v1735 = vadd.f32 %v1734, %v1608
        %v1736 = vadd.f32 %v1735, %v1609
        %v1737 = vadd.f32 %v1736, %v1610
        %v1738 = vadd.f32 %v1737, %v1611
        %v1739 = vadd.f32 %v1738, %v1612
        %v1740 = vadd.f32 %v1739, %v1613
        %v1741 = vadd.f32 %v1740, %v1614
        %v1742 = vadd.f32 %v1741, %v1615
        %v1743 = vadd.f32 %v1742, %v1616
        %v1744 = vadd.f32 %v1743, %v1617
        %v1745 = vadd.f32 %v1744, %v1618
        %v1746 = vadd.f32 %v1745, %v1619
        %v1747 = vadd.f32 %v1746, %v1620
        %v1748 = vadd.f32 %v1747, %v1621
        %v1749 = vadd.f32 %v1748, %v1622
        %v1750 = vadd.f32 %v1749, %v1623
        %v1751 = vadd.f32 %v1750, %v1624
        %v1752 = vadd.f32 %v1751, %v1625
        %v1753 = vadd.f32 %v1752, %v1626
        %v1754 = vadd.f32 %v1753, %v1627
        %v1755 = vadd.f32 %v1754, %v1628
        %v1756 = vadd.f32 %v1755, %v1629
        %v1757 = vadd.f32 %v1756, %v1630
        %v1758 = vadd.f32 %v1757, %v1631
        %v1759 = vadd.f32 %v1758, %v1632
        %v1760 = vadd.f32 %v1759, %v1633
        %v1761 = vadd.f32 %v1760, %v1634
        %v1762 = vadd.f32 %v1761, %v1635
        %v1763 = vadd.f32 %v1762, %v1636
        %v1764 = vadd.f32 %v1763, %v1637
        %v1765 = vadd.f32 %v1764, %v1638
        %v1766 = vadd.f32 %v1765, %v1639
        %v1767 = vadd.f32 %v1766, %v1640
        %v1768 = vadd.f32 %v1767, %v1641
        %v1769 = vadd.f32 %v1768, %v1642
        %v1770 = vadd.f32 %v1769, %v1643
        %v1771 = vadd.f32 %v1770, %v1644
        %v1772 = vadd.f32 %v1771, %v1645
        %v1773 = vadd.f32 %v1772, %v1646
        %v1774 = vadd.f32 %v1773, %v1647
        %v1775 = vadd.f32 %v1774, %v1648
        %v1776 = vadd.f32 %v1775, %v1649
        %v1777 = vadd.f32 %v1776, %v1650
        %v1778 = vadd.f32 %v1777, %v1651
        %v1779 = vadd.f32 %v1778, %v1652
        %v1780 = vadd.f32 %v1779, %v1653
        %v1781 = vadd.f32 %v1780, %v1654
        %v1782 = vadd.f32 %v1781, %v1655
        %v1783 = vadd.f32 %v1782, %v1656
        %v1784 = vadd.f32 %v1783, %v1657
        %v1785 = vadd.f32 %v1784, %v1658
        %v1786 = vadd.f32 %v1785, %v1659
        %v1787 = vadd.f32 %v1786, %v1660
        %v1788 = vadd.f32 %v1787, %v1661
        %v1789 = vadd.f32 %v1788, %v1662
        %v1790 = vadd.f32 %v1789, %v1663
        %v1791 = vadd.f32 %v1790, %v1664
        %v1792 = vadd.f32 %v1791, %v1665
        %v1793 = vadd.f32 %v1792, %v1666
        %v1794 = vadd.f32 %v1793, %v1667
        %v1795 = vadd.f32 %v1794, %v1668
        %v1796 = vadd.f32 %v1795, %v1669
        %v1797 = vadd.f32 %v1796, %v1670
        %v1798 = vadd.f32 %v1797, %v1671
        %v1799 = vadd.f32 %v1798, %v1672
        %v1800 = vadd.f32 %v1799, %v1673
        %v1801 = vadd.f32 %v1800, %v1674
        %v1802 = vadd.f32 %v1801, %v1675
        %v1803 = vadd.f32 %v1802, %v1676
        %v1804 = vadd.f32 %v1803, %v1677
        %v1805 = vadd.f32 %v1804, %v1678
        %v1806 = vadd.f32 %v1805, %v1679
        %v1807 = vadd.f32 %v1806, %v1680
        %v1808 = vadd.f32 %v1807, %v1681
        %v1809 = vadd.f32 %v1808, %v1682
        %v1810 = vadd.f32 %v1809, %v1683
        %v1811 = vadd.f32 %v1810, %v1684
        %v1812 = vadd.f32 %v1811, %v1685
        %v1813 = vadd.f32 %v1812, %v1686
        %v1814 = vadd.f32 %v1813, %v1687
        %v1815 = vadd.f32 %v1814, %v1688
        %v1816 = vadd.f32 %v1815, %v1689
        %v1817 = vadd.f32 %v1816, %v1690
        %v1818 = vadd.f32 %v1817, %v1691
        %v1819 = vadd.f32 %v1818, %v1692
        %v1820 = vadd.f32 %v1819, %v1693
        %v1821 = vadd.f32 %v1820, %v1694
        %v1822 = vadd.f32 %v1821, %v1695
        %v1823 = vadd.f32 %v1822, %v1696
        %v1824 = vadd.f32 %v1823, %v1697
        %v1825 = vadd.f32 %v1824, %v1698
        %v1826 = vadd.f32 %v1825, %v1699
        %v1827 = vadd.f32 %v1826, %v1700
        %v1828 = vadd.f32 %v1827, %v1701
        %v1829 = vadd.f32 %v1828, %v1702
        %v1830 = vadd.f32 %v1829, %v1703
        %v1831 = vadd.f32 %v1830, %v1704
        %v1832 = vadd.f32 %v1831, %v1705
        %v1833 = vadd.f32 %v1832, %v1706
        %v1834 = vadd.f32 %v1833, %v1707
        %v1835 = vadd.f32 %v1834, %v1708
        %v1836 = vadd.f32 %v1835, %v1709
        %v1837 = vadd.f32 %v1836, %v1710
        %v1838 = vadd.f32 %v1837, %v1711
        %v1839 = vadd.f32 %v1838, %v1712
        %v1840 = vadd.f32 %v1839, %v1713
        %v1841 = vadd.f32 %v1840, %v1714
        %v1842 = vadd.f32 %v1841, %v1715
        %v1843 = vadd.f32 %v1842, %v1716
        %v1844 = vrot.slane %v1843, 4
        %v1845 = vadd.f32 %v1843, %v1844
        %v1846 = vrot.slane %v1845, 2
        %v1847 = vadd.f32 %v1845, %v1846
        %v1848 = vrot.slane %v1847, 1
        %v1849 = vadd.f32 %v1847, %v1848
        %v1850 = vadd.f32 %v1588, %v1849
        %1851 = vst [vmem:[#allocation6] sm:$0x1] %v1850
        %s1852 = sand.u32 %s75, 1
        %s1853 = scalar_lea.sflag [#allocation3], %s1852
        %s1854 = sand.u32 %s75, 1
        %s1855 = smul.addr %s1854, 512
        %s1856 = scalar_lea.vmem [#allocation2], %s1855
        // Predicated region
        $region33: #{tpu_custom_call.1} parent=27 // pred_check
          %p1857 = pneg %p85
        $region34: #{tpu_custom_call.1} parent=27 // pred_check_branch
          %1859 = sbr.rel (%p1857) target = $region36
        $region35: #{tpu_custom_call.1} parent=27 // pred_region
          %s1860 = smul.u32 128, %s20
          %1862 = vsyncadd %s1853, 0
          %s1863 = smul.addr %s1860, 4
          %s1864 = scalar_lea.hbm %s2, %s1863
          %s1865 = sshll.u32 %s1856, 4
          %s1866 = int_to_ptr.vmem [resolvable:$true] %s1865
          %s1867 = sshll.u32 %s1864, 4
          %s1868 = int_to_ptr.hbm [resolvable:$true] %s1867
          %1873 = dma.vmem_to_hbm [thread:$0]  %s1866, 8192, %s1868, %s1853, 64, 64, 4
        $region36: #{tpu_custom_call.1} parent=27 // pred_fallthru
          _
        // Predicated region
        $region37: #{tpu_custom_call.1} parent=27 // pred_check
          %p1874 = pneg %p106
        $region38: #{tpu_custom_call.1} parent=27 // pred_check_branch
          %1876 = sbr.rel (%p1874) target = $region40
        $region39: #{tpu_custom_call.1} parent=27 // pred_region
          %1878 = vsyncadd [#allocation5], 0
          %s1880 = sshll.u32 [#allocation4], 4
          %s1881 = int_to_ptr.vmem [resolvable:$true] %s1880
          %s1882 = sshll.u32 %s3, 4
          %s1883 = int_to_ptr.hbm [resolvable:$true] %s1882
          %1885 = dma.vmem_to_hbm [thread:$0]  %s1881, 16, %s1883, [#allocation5]
        $region40: #{tpu_custom_call.1} parent=27 // pred_fallthru
          _
        // Predicated region
        $region41: #{tpu_custom_call.1} parent=27 // pred_check
          %p1886 = pneg %p127
        $region42: #{tpu_custom_call.1} parent=27 // pred_check_branch
          %1888 = sbr.rel (%p1886) target = $region44
        $region43: #{tpu_custom_call.1} parent=27 // pred_region
          %1890 = vsyncadd [#allocation5], 0
          %s1892 = sshll.u32 [#allocation6], 4
          %s1893 = int_to_ptr.vmem [resolvable:$true] %s1892
          %s1894 = sshll.u32 %s4, 4
          %s1895 = int_to_ptr.hbm [resolvable:$true] %s1894
          %1897 = dma.vmem_to_hbm [thread:$0]  %s1893, 16, %s1895, [#allocation5]
        $region44: #{tpu_custom_call.1} parent=27 // pred_fallthru
          _
        // Predicated region
        $region45: #{tpu_custom_call.1} parent=27 // pred_check
          %p1898 = pneg %p106
        $region46: #{tpu_custom_call.1} parent=27 // pred_check_branch
          %1900 = sbr.rel (%p1898) target = $region48
        $region47: #{tpu_custom_call.1} parent=27 // pred_region
          %1902 = dma.done [#allocation5], 16
        $region48: #{tpu_custom_call.1} parent=27 // pred_fallthru
          _
        // Predicated region
        $region49: #{tpu_custom_call.1} parent=27 // pred_check
          %p1903 = pneg %p127
        $region50: #{tpu_custom_call.1} parent=27 // pred_check_branch
          %1905 = sbr.rel (%p1903) target = $region52
        $region51: #{tpu_custom_call.1} parent=27 // pred_region
          %1907 = dma.done [#allocation5], 16
        $region52: #{tpu_custom_call.1} parent=27 // pred_fallthru
          _
      $region28: #{tpu_custom_call.1} parent=5 // pred_fallthru
        _
      %p1908 = scmp.le.s32.totalorder 2, %s15
      // Predicated region
      $region53: #{tpu_custom_call.1} parent=5 // pred_check
        %p1909 = pneg %p1908
      $region54: #{tpu_custom_call.1} parent=5 // pred_check_branch
        %1911 = sbr.rel (%p1909) target = $region56
      $region55: #{tpu_custom_call.1} parent=5 // pred_region
        %s1912 = ssub.s32 %s15, 2
        // Predicated region
        $region57: #{tpu_custom_call.1} parent=55 // pred_check
          %p1913 = pneg %p91
        $region58: #{tpu_custom_call.1} parent=55 // pred_check_branch
          %1915 = sbr.rel (%p1913) target = $region60
        $region59: #{tpu_custom_call.1} parent=55 // pred_region
          %s1916 = sand.u32 %s76, 1
          %s1917 = scalar_lea.sflag [#allocation3], %s1916
          %s1918 = sand.u32 %s76, 1
          %s1919 = smul.addr %s1918, 512
          %s1920 = scalar_lea.vmem [#allocation2], %s1919
          %1922 = dma.done %s1917, 8192
        $region60: #{tpu_custom_call.1} parent=55 // pred_fallthru
          _
      $region56: #{tpu_custom_call.1} parent=5 // pred_fallthru
        _
    $region6: #{tpu_custom_call.1} parent=1 // loop_footer
      %s19 = sadd.s32 1, %s15
    $region7: #{tpu_custom_call.1} parent=1 // loop_footer_branch
      %14 = sbr.rel target = $region3
    $region8: #{tpu_custom_call.1} parent=1 // loop_exit
      _
    %1923 = vsyncpa [#allocation3], 1
    %s1924 = scalar_lea.sflag [#allocation3], 1
    %1925 = vsyncpa %s1924, 1
    %1926 = vsyncpa [#allocation5], 1

</llo_original>
